<compile_context>
chip_gen: v7x
topology: tpu7x:2x2x1
jax: 0.10.0
libtpu: 0.0.40
codegen_flags: <defaults>
</compile_context>

<pallas_src>
import math
from functools import partial

import jax
import jax.numpy as jnp
import numpy as np
from jax.experimental import pallas as pl
from jax.experimental.pallas import tpu as pltpu


# ----------------------------------------------------------------------------
# Fourier frequency bands (static python floats, baked into the kernel trace)
# ----------------------------------------------------------------------------
def make_freq_bands(num_freqs, use_logspace=True, max_freq=None):
    if num_freqs <= 0:
        return ()
    if use_logspace:
        return tuple((2.0 ** i) * math.pi for i in range(num_freqs))
    assert max_freq is not None
    # torch.linspace(0, max_freq, steps=k+1)[:-1]
    step = max_freq / num_freqs
    return tuple((2.0 ** (i * step)) * math.pi for i in range(num_freqs))


def _round_up(x, m):
    return ((x + m - 1) // m) * m


def _choose_tile_m(M, tile_m):
    """Pick the lane-tile size.

    - multiple of 128 (lane-dense stores),
    - per-step VMEM model (~200 live f32 rows of length tm: activations,
      Fourier features, double-buffered uv/out blocks) kept under 24 MiB so the
      default 32 MiB scoped VMEM limit holds on every generation (v7x = 64 MiB
      physical / 32 MiB scoped) without a vmem_limit_bytes override,
    - at least 4 (min 2) grid steps when M allows, so v7x megacore can shard
      the "parallel" grid axis across its two TensorCores.
    """
    vmem_cap_tm = (24 * 1024 * 1024) // (200 * 4)          # ~31K lanes
    tm = min(int(tile_m), vmem_cap_tm, max(int(M), 1))
    if M >= 4 * 128:
        tm = min(tm, -(-M // 4))                            # aim for >= 4 steps
    elif M >= 2 * 128:
        tm = min(tm, -(-M // 2))                            # at least 2 steps
    return max(_round_up(tm, 128), 128)


# ----------------------------------------------------------------------------
# Pallas kernel: pos-enc + MLP (LeakyReLU 0.2) + final linear + sigmoid
# Feature-major layout: every activation is (feat, TM), TM on lanes.
# ----------------------------------------------------------------------------
def texture_mlp_kernel(*refs, freq_bands, use_recurrence, in_dims, num_linears,
                       mxu_dtype):
    # refs = (uv_ref, packed_layer_0, ..., packed_layer_{L-1}, out_ref)
    uv_ref = refs[0]
    layer_refs = refs[1:1 + num_linears]
    out_ref = refs[1 + num_linears]

    uv = uv_ref[...].astype(jnp.float32)                    # (uv_dim, TM)
    k = len(freq_bands)

    # ---- Fourier features: f-major band order, points stay on lanes --------
    if k > 0:
        if use_recurrence:
            # logspace bands are 2^i * pi: evaluate only the base band and use
            # the double-angle recurrence for the rest (k x fewer sin/cos).
            ang0 = freq_bands[0] * uv                        # pi * uv
            c = jnp.cos(ang0)
            s = jnp.sin(ang0)
            cos_l, sin_l = [c], [s]
            for _ in range(1, k):
                c, s = 2.0 * c * c - 1.0, 2.0 * s * c
                cos_l.append(c)
                sin_l.append(s)
        else:
            # linspace bands: direct evaluation per band.
            cos_l = [jnp.cos(f * uv) for f in freq_bands]
            sin_l = [jnp.sin(f * uv) for f in freq_bands]
        feat = jnp.concatenate(cos_l + sin_l + [uv], axis=0)  # (2dk+uv_dim, TM)
    else:
        feat = uv

    def mxu_dot(w, x):
        if mxu_dtype is not None:
            w = w.astype(mxu_dtype)
            x = x.astype(mxu_dtype)
        return jnp.dot(w, x, preferred_element_type=jnp.float32)

    # ---- MLP: Linear / LeakyReLU(0.2) stack, final Linear ------------------
    # Layer 0 is a single merged dot against [cos; sin; uv] (W0 columns were
    # permuted/packed to match in the wrapper).
    h = feat
    for li in range(num_linears):
        wl = layer_refs[li][...].astype(jnp.float32)         # (out_l, in_l + 1)
        d_in = in_dims[li]
        h = mxu_dot(wl[:, :d_in], h) + wl[:, d_in:d_in + 1]
        if li < num_linears - 1:
            h = jnp.maximum(h, 0.2 * h)                      # LeakyReLU(0.2)

    out_ref[...] = jax.nn.sigmoid(h).astype(out_ref.dtype)   # (out_ch, TM)


# ----------------------------------------------------------------------------
# Wrapper
# ----------------------------------------------------------------------------
def texture_mlp_forward(uv, weights, biases, *, num_freqs, use_logspace=True,
                        max_freq=None, tile_m=16384, mxu_dtype=None):
    """uv: (..., uv_dim). weights[i]: (in_i, out_i), biases[i]: (out_i,).

    mxu_dtype=None keeps exact f32 MXU inputs; jnp.bfloat16 runs the dots with
    bf16 operands and f32 accumulation (faster on v6e/v7x, ~1e-3 abs error).
    """
    uv_dim = int(uv.shape[-1])
    lead_shape = uv.shape[:-1]
    M = int(np.prod(lead_shape)) if lead_shape else 1
    out_ch = int(weights[-1].shape[1])
    num_linears = len(weights)
    freq_bands = make_freq_bands(num_freqs, use_logspace, max_freq)
    k = len(freq_bands)
    dk = uv_dim * k
    in_dims = tuple(int(w.shape[0]) for w in weights)

    # ---- pack each layer as (out, in+1) = [W^T | b]; layer-0 cos/sin column
    #      blocks permuted from torch's d-major order to the kernel's f-major.
    packed = []
    for li, (w, b) in enumerate(zip(weights, biases)):
        wt = jnp.asarray(w, jnp.float32).T                  # (out, in)
        bcol = jnp.asarray(b, jnp.float32).reshape(-1, 1)   # (out, 1)
        if li == 0 and dk > 0:
            perm = np.array([d * k + f for f in range(k) for d in range(uv_dim)])
            wc = wt[:, :dk][:, perm]
            ws = wt[:, dk:2 * dk][:, perm]
            wu = wt[:, 2 * dk:2 * dk + uv_dim]
            packed.append(jnp.concatenate([wc, ws, wu, bcol], axis=1))
        else:
            packed.append(jnp.concatenate([wt, bcol], axis=1))

    # ---- tiling: points on the lane axis, ragged last block (no pad copy) ---
    tm = _choose_tile_m(M, tile_m)
    grid = (pl.cdiv(M, tm),)
    uv_t = jnp.asarray(uv, jnp.float32).reshape(M, uv_dim).T   # (uv_dim, M)

    in_specs = [pl.BlockSpec((uv_dim, tm), lambda i: (0, i))]
    for p in packed:
        in_specs.append(pl.BlockSpec(p.shape, lambda i: (0, 0)))

    kernel = partial(texture_mlp_kernel, freq_bands=freq_bands,
                     use_recurrence=bool(use_logspace), in_dims=in_dims,
                     num_linears=num_linears, mxu_dtype=mxu_dtype)

    out_t = pl.pallas_call(
        kernel,
        out_shape=jax.ShapeDtypeStruct((out_ch, M), jnp.float32),
        grid_spec=pltpu.PrefetchScalarGridSpec(
            num_scalar_prefetch=0,
            grid=grid,
            in_specs=in_specs,
            out_specs=pl.BlockSpec((out_ch, tm), lambda i: (0, i)),
        ),
        compiler_params=pltpu.CompilerParams(
            dimension_semantics=("parallel",)),
    )(uv_t, *packed)

    return out_t.T.reshape(*lead_shape, out_ch)


# ----------------------------------------------------------------------------
# Parameter construction (deterministic, synthetic)
# ----------------------------------------------------------------------------
def init_texture_mlp_params(key, uv_dim, out_channels, num_freqs, num_layers,
                            width):
    enc_dim = uv_dim + 2 * uv_dim * max(num_freqs, 0)
    dims = [enc_dim] + [width] * (num_layers + 1) + [out_channels]
    weights, biases = [], []
    for i in range(len(dims) - 1):
        key, kw, kb = jax.random.split(key, 3)
        scale = 1.0 / math.sqrt(dims[i])
        weights.append(jax.random.uniform(kw, (dims[i], dims[i + 1]),
                                          jnp.float32, -scale, scale))
        biases.append(jax.random.uniform(kb, (dims[i + 1],),
                                         jnp.float32, -scale, scale))
    return weights, biases


# ----------------------------------------------------------------------------
# Pure-JAX reference (matches the torch module)
# ----------------------------------------------------------------------------
def texture_mlp_ref(uv, weights, biases, *, num_freqs, use_logspace=True,
                    max_freq=None):
    freqs = jnp.asarray(make_freq_bands(num_freqs, use_logspace, max_freq),
                        jnp.float32)
    if num_freqs > 0:
        embed = (uv[..., None] * freqs).reshape(*uv.shape[:-1], -1)
        h = jnp.concatenate([jnp.cos(embed), jnp.sin(embed), uv], axis=-1)
    else:
        h = uv
    for i, (w, b) in enumerate(zip(weights, biases)):
        h = h @ w + b
        if i < len(weights) - 1:
            h = jnp.where(h > 0, h, 0.2 * h)
    return jax.nn.sigmoid(h)


if __name__ == "__main__":
    # Module hyperparameters (small, consistent with the forward pass).
    uv_dim, out_channels = 3, 3
    num_freqs, num_layers, width = 4, 2, 32

    key = jax.random.PRNGKey(0)
    key, kp = jax.random.split(key)
    weights, biases = init_texture_mlp_params(kp, uv_dim, out_channels,
                                              num_freqs, num_layers, width)

    def make_uv(k_, lead):
        x = jax.random.normal(k_, lead + (uv_dim,), jnp.float32)
        return x / jnp.linalg.norm(x, axis=-1, keepdims=True)

    key, k1, k2 = jax.random.split(key, 3)
    uv_a = make_uv(k1, (2, 32, 32))   # M = 2048 -> tm 512, 4 parallel steps
    uv_b = make_uv(k2, (2, 25, 40))   # M = 2000 -> ragged last block

    # f32 MXU path, logspace bands (double-angle recurrence) — exact check.
    for uv in (uv_a, uv_b):
        out = jax.block_until_ready(texture_mlp_forward(
            uv, weights, biases, num_freqs=num_freqs, use_logspace=True))
        ref = texture_mlp_ref(uv, weights, biases, num_freqs=num_freqs,
                              use_logspace=True)
        assert out.shape == uv.shape[:-1] + (out_channels,)
        assert bool(jnp.allclose(out, ref, atol=5e-5, rtol=1e-5))

    # linspace bands (direct per-band cos/sin path).
    out = jax.block_until_ready(texture_mlp_forward(
        uv_a, weights, biases, num_freqs=num_freqs, use_logspace=False,
        max_freq=3.0))
    ref = texture_mlp_ref(uv_a, weights, biases, num_freqs=num_freqs,
                          use_logspace=False, max_freq=3.0)
    assert bool(jnp.allclose(out, ref, atol=5e-5, rtol=1e-5))

    # bf16 MXU inputs (f32 accumulation, f32 VPU math) — looser tolerance.
    out = jax.block_until_ready(texture_mlp_forward(
        uv_a, weights, biases, num_freqs=num_freqs, use_logspace=True,
        mxu_dtype=jnp.bfloat16))
    ref = texture_mlp_ref(uv_a, weights, biases, num_freqs=num_freqs,
                          use_logspace=True)
    assert bool(jnp.allclose(out, ref, atol=2e-2, rtol=0.0))

    print("KERNEL_OK")
</pallas_src>

<mosaic_0001>
module attributes {stable_mosaic.version = 11 : i64} {
  func.func @texture_mlp_kernel(%arg0: i32, %arg1: memref<3x512xf32, #tpu.memory_space<vmem>>, %arg2: memref<32x28xf32, #tpu.memory_space<vmem>>, %arg3: memref<32x33xf32, #tpu.memory_space<vmem>>, %arg4: memref<32x33xf32, #tpu.memory_space<vmem>>, %arg5: memref<3x33xf32, #tpu.memory_space<vmem>>, %arg6: memref<3x512xf32, #tpu.memory_space<vmem>>) attributes {dimension_semantics = [#tpu.dimension_semantics<parallel>], iteration_bounds = array<i64: 4>, scalar_prefetch = 0 : i64, scratch_operands = 0 : i64, tpu.core_type = #tpu.core_type<tc>, window_params = [{transform_indices = @transform_0, window_bounds = array<i64: 3, 512>}, {pipeline_mode = #tpu.pipeline_mode<synchronous>, transform_indices = @transform_1, window_bounds = array<i64: 32, 28>}, {pipeline_mode = #tpu.pipeline_mode<synchronous>, transform_indices = @transform_2, window_bounds = array<i64: 32, 33>}, {pipeline_mode = #tpu.pipeline_mode<synchronous>, transform_indices = @transform_3, window_bounds = array<i64: 32, 33>}, {pipeline_mode = #tpu.pipeline_mode<synchronous>, transform_indices = @transform_4, window_bounds = array<i64: 3, 33>}, {transform_indices = @transform_5, window_bounds = array<i64: 3, 512>}]} {
    %c0 = arith.constant 0 : index
    %c0_0 = arith.constant 0 : index
    %0 = vector.load %arg1[%c0, %c0_0] : memref<3x512xf32, #tpu.memory_space<vmem>>, vector<3x512xf32>
    %cst = arith.constant 3.14159274 : f32
    %1 = vector.broadcast %cst : f32 to vector<3x512xf32>
    %2 = arith.mulf %1, %0 : vector<3x512xf32>
    %3 = math.cos %2 : vector<3x512xf32>
    %4 = math.sin %2 : vector<3x512xf32>
    %cst_1 = arith.constant 2.000000e+00 : f32
    %5 = vector.broadcast %cst_1 : f32 to vector<3x512xf32>
    %6 = arith.mulf %5, %3 : vector<3x512xf32>
    %7 = arith.mulf %6, %3 : vector<3x512xf32>
    %cst_2 = arith.constant 1.000000e+00 : f32
    %8 = vector.broadcast %cst_2 : f32 to vector<3x512xf32>
    %9 = arith.subf %7, %8 : vector<3x512xf32>
    %cst_3 = arith.constant 2.000000e+00 : f32
    %10 = vector.broadcast %cst_3 : f32 to vector<3x512xf32>
    %11 = arith.mulf %10, %4 : vector<3x512xf32>
    %12 = arith.mulf %11, %3 : vector<3x512xf32>
    %cst_4 = arith.constant 2.000000e+00 : f32
    %13 = vector.broadcast %cst_4 : f32 to vector<3x512xf32>
    %14 = arith.mulf %13, %9 : vector<3x512xf32>
    %15 = arith.mulf %14, %9 : vector<3x512xf32>
    %cst_5 = arith.constant 1.000000e+00 : f32
    %16 = vector.broadcast %cst_5 : f32 to vector<3x512xf32>
    %17 = arith.subf %15, %16 : vector<3x512xf32>
    %cst_6 = arith.constant 2.000000e+00 : f32
    %18 = vector.broadcast %cst_6 : f32 to vector<3x512xf32>
    %19 = arith.mulf %18, %12 : vector<3x512xf32>
    %20 = arith.mulf %19, %9 : vector<3x512xf32>
    %cst_7 = arith.constant 2.000000e+00 : f32
    %21 = vector.broadcast %cst_7 : f32 to vector<3x512xf32>
    %22 = arith.mulf %21, %17 : vector<3x512xf32>
    %23 = arith.mulf %22, %17 : vector<3x512xf32>
    %cst_8 = arith.constant 1.000000e+00 : f32
    %24 = vector.broadcast %cst_8 : f32 to vector<3x512xf32>
    %25 = arith.subf %23, %24 : vector<3x512xf32>
    %cst_9 = arith.constant 2.000000e+00 : f32
    %26 = vector.broadcast %cst_9 : f32 to vector<3x512xf32>
    %27 = arith.mulf %26, %20 : vector<3x512xf32>
    %28 = arith.mulf %27, %17 : vector<3x512xf32>
    %29 = tpu.concatenate %3, %9, %17, %25, %4, %12, %20, %28, %0 in 0 : vector<3x512xf32>, vector<3x512xf32>, vector<3x512xf32>, vector<3x512xf32>, vector<3x512xf32>, vector<3x512xf32>, vector<3x512xf32>, vector<3x512xf32>, vector<3x512xf32> -> vector<27x512xf32>
    %c0_10 = arith.constant 0 : index
    %c0_11 = arith.constant 0 : index
    %30 = vector.load %arg2[%c0_10, %c0_11] : memref<32x28xf32, #tpu.memory_space<vmem>>, vector<32x28xf32>
    %31 = vector.extract_strided_slice %30 {offsets = [0, 0], sizes = [32, 27], strides = [1, 1]} : vector<32x28xf32> to vector<32x27xf32>
    %cst_12 = arith.constant dense<0.000000e+00> : vector<32x512xf32>
    %32 = tpu.matmul %31, %29, %cst_12 {dimension_numbers = #tpu.dot_dimension_numbers<[1], [0], [0], [1], [0, 0, 1, 1], [], []>} : vector<32x27xf32>, vector<27x512xf32>, vector<32x512xf32> -> vector<32x512xf32>
    %33 = vector.extract_strided_slice %30 {offsets = [0, 27], sizes = [32, 1], strides = [1, 1]} : vector<32x28xf32> to vector<32x1xf32>
    %34 = vector.broadcast %33 : vector<32x1xf32> to vector<32x512xf32>
    %35 = arith.addf %32, %34 : vector<32x512xf32>
    %cst_13 = arith.constant 2.000000e-01 : f32
    %36 = vector.broadcast %cst_13 : f32 to vector<32x512xf32>
    %37 = arith.mulf %36, %35 : vector<32x512xf32>
    %38 = arith.maximumf %35, %37 : vector<32x512xf32>
    %c0_14 = arith.constant 0 : index
    %c0_15 = arith.constant 0 : index
    %39 = vector.load %arg3[%c0_14, %c0_15] : memref<32x33xf32, #tpu.memory_space<vmem>>, vector<32x33xf32>
    %40 = vector.extract_strided_slice %39 {offsets = [0, 0], sizes = [32, 32], strides = [1, 1]} : vector<32x33xf32> to vector<32x32xf32>
    %cst_16 = arith.constant dense<0.000000e+00> : vector<32x512xf32>
    %41 = tpu.matmul %40, %38, %cst_16 {dimension_numbers = #tpu.dot_dimension_numbers<[1], [0], [0], [1], [0, 0, 1, 1], [], []>} : vector<32x32xf32>, vector<32x512xf32>, vector<32x512xf32> -> vector<32x512xf32>
    %42 = vector.extract_strided_slice %39 {offsets = [0, 32], sizes = [32, 1], strides = [1, 1]} : vector<32x33xf32> to vector<32x1xf32>
    %43 = vector.broadcast %42 : vector<32x1xf32> to vector<32x512xf32>
    %44 = arith.addf %41, %43 : vector<32x512xf32>
    %cst_17 = arith.constant 2.000000e-01 : f32
    %45 = vector.broadcast %cst_17 : f32 to vector<32x512xf32>
    %46 = arith.mulf %45, %44 : vector<32x512xf32>
    %47 = arith.maximumf %44, %46 : vector<32x512xf32>
    %c0_18 = arith.constant 0 : index
    %c0_19 = arith.constant 0 : index
    %48 = vector.load %arg4[%c0_18, %c0_19] : memref<32x33xf32, #tpu.memory_space<vmem>>, vector<32x33xf32>
    %49 = vector.extract_strided_slice %48 {offsets = [0, 0], sizes = [32, 32], strides = [1, 1]} : vector<32x33xf32> to vector<32x32xf32>
    %cst_20 = arith.constant dense<0.000000e+00> : vector<32x512xf32>
    %50 = tpu.matmul %49, %47, %cst_20 {dimension_numbers = #tpu.dot_dimension_numbers<[1], [0], [0], [1], [0, 0, 1, 1], [], []>} : vector<32x32xf32>, vector<32x512xf32>, vector<32x512xf32> -> vector<32x512xf32>
    %51 = vector.extract_strided_slice %48 {offsets = [0, 32], sizes = [32, 1], strides = [1, 1]} : vector<32x33xf32> to vector<32x1xf32>
    %52 = vector.broadcast %51 : vector<32x1xf32> to vector<32x512xf32>
    %53 = arith.addf %50, %52 : vector<32x512xf32>
    %cst_21 = arith.constant 2.000000e-01 : f32
    %54 = vector.broadcast %cst_21 : f32 to vector<32x512xf32>
    %55 = arith.mulf %54, %53 : vector<32x512xf32>
    %56 = arith.maximumf %53, %55 : vector<32x512xf32>
    %c0_22 = arith.constant 0 : index
    %c0_23 = arith.constant 0 : index
    %57 = vector.load %arg5[%c0_22, %c0_23] : memref<3x33xf32, #tpu.memory_space<vmem>>, vector<3x33xf32>
    %58 = vector.extract_strided_slice %57 {offsets = [0, 0], sizes = [3, 32], strides = [1, 1]} : vector<3x33xf32> to vector<3x32xf32>
    %cst_24 = arith.constant dense<0.000000e+00> : vector<3x512xf32>
    %59 = tpu.matmul %58, %56, %cst_24 {dimension_numbers = #tpu.dot_dimension_numbers<[1], [0], [0], [1], [0, 0, 1, 1], [], []>} : vector<3x32xf32>, vector<32x512xf32>, vector<3x512xf32> -> vector<3x512xf32>
    %60 = vector.extract_strided_slice %57 {offsets = [0, 32], sizes = [3, 1], strides = [1, 1]} : vector<3x33xf32> to vector<3x1xf32>
    %61 = vector.broadcast %60 : vector<3x1xf32> to vector<3x512xf32>
    %62 = arith.addf %59, %61 : vector<3x512xf32>
    %63 = arith.negf %62 : vector<3x512xf32>
    %64 = math.exp %63 : vector<3x512xf32>
    %cst_25 = arith.constant 1.000000e+00 : f32
    %65 = vector.broadcast %cst_25 : f32 to vector<3x512xf32>
    %66 = arith.addf %65, %64 : vector<3x512xf32>
    %67 = arith.divf %65, %66 : vector<3x512xf32>
    %c0_26 = arith.constant 0 : index
    %c0_27 = arith.constant 0 : index
    %68 = vector.load %arg6[%c0_26, %c0_27] : memref<3x512xf32, #tpu.memory_space<vmem>>, vector<3x512xf32>
    tpu.vector_store %arg6[%c0_26, %c0_27], %67 {strides = array<i32>} : memref<3x512xf32, #tpu.memory_space<vmem>>, vector<3x512xf32>,
    return
  }
  func.func @transform_0(%arg0: i32) -> (i32, i32) {
    %c0_i32 = arith.constant 0 : i32
    %c0_i32_0 = arith.constant 0 : i32
    return %c0_i32, %arg0 : i32, i32
  }
  func.func @transform_1(%arg0: i32) -> (i32, i32) {
    %c0_i32 = arith.constant 0 : i32
    %c0_i32_0 = arith.constant 0 : i32
    %c0_i32_1 = arith.constant 0 : i32
    return %c0_i32, %c0_i32_0 : i32, i32
  }
  func.func @transform_2(%arg0: i32) -> (i32, i32) {
    %c0_i32 = arith.constant 0 : i32
    %c0_i32_0 = arith.constant 0 : i32
    %c0_i32_1 = arith.constant 0 : i32
    return %c0_i32, %c0_i32_0 : i32, i32
  }
  func.func @transform_3(%arg0: i32) -> (i32, i32) {
    %c0_i32 = arith.constant 0 : i32
    %c0_i32_0 = arith.constant 0 : i32
    %c0_i32_1 = arith.constant 0 : i32
    return %c0_i32, %c0_i32_0 : i32, i32
  }
  func.func @transform_4(%arg0: i32) -> (i32, i32) {
    %c0_i32 = arith.constant 0 : i32
    %c0_i32_0 = arith.constant 0 : i32
    %c0_i32_1 = arith.constant 0 : i32
    return %c0_i32, %c0_i32_0 : i32, i32
  }
  func.func @transform_5(%arg0: i32) -> (i32, i32) {
    %c0_i32 = arith.constant 0 : i32
    %c0_i32_0 = arith.constant 0 : i32
    return %c0_i32, %arg0 : i32, i32
  }
}

</mosaic_0001>

<llo_original>
// kernel: tpu_custom_call.1
$region0: #{tpu_custom_call.1}
  #allocation0 [shape = 'u32[]', space=smem, size = 0x4, offset = 0x4, fixed_abs, tag = 'smem constant byte address 0x4 - core index']
  #allocation1 [shape = 'u32[144,128]{1,0:T(1,128)}', space=vmem, size = 0x12000, scoped, tag = 'internal scratch']
  %s0 = inlined_call_operand.hbm [shape: f32[3,2048], index: 0, kind: input, shape index: {}]
  %s1 = inlined_call_operand.hbm [shape: f32[32,28], index: 1, kind: input, shape index: {}]
  %s2 = inlined_call_operand.hbm [shape: f32[32,33], index: 2, kind: input, shape index: {}]
  %s3 = inlined_call_operand.hbm [shape: f32[32,33], index: 3, kind: input, shape index: {}]
  %s4 = inlined_call_operand.vmem [shape: f32[3,33], index: 4, kind: input, shape index: {}]
  %s5 = inlined_call_operand.hbm [shape: f32[3,2048], index: 5, kind: output, shape index: {}]
  %s6 = sld [smem:[#allocation0]]
  $region69: #{tpu_custom_call.1} parent=0
    _
  %s8 = ssub.s32 1, %s6
  %s9 = scalar_select 0, %s8, %s6
  $region1: #{tpu_custom_call.1} parent=0
    #allocation2 [shape = 'u8[16384]{0}', space=vmem, size = 0x4000, scoped, tag = 'input window, operand 0']
    #allocation3 [shape = 's32[2]{0}', space=sflag, size = 0x8, scoped, tag = 'scoped memory for tpu_custom_call.1']
    #allocation4 [shape = 's32[2]{0}', space=sflag, size = 0x8, scoped, tag = 'scoped memory for tpu_custom_call.1']
    #allocation5 [shape = 'u8[16384]{0}', space=vmem, size = 0x4000, scoped, tag = 'input window, operand 1, single buffered']
    #allocation6 [shape = 's32[1]{0}', space=sflag, size = 0x4, scoped, tag = 'scoped memory for tpu_custom_call.1']
    #allocation7 [shape = 'u8[16384]{0}', space=vmem, size = 0x4000, scoped, tag = 'input window, operand 2, single buffered']
    #allocation8 [shape = 'u8[16384]{0}', space=vmem, size = 0x4000, scoped, tag = 'input window, operand 3, single buffered']
    #allocation9 [shape = 's32[1]{0}', space=sflag, size = 0x4, scoped, tag = 'scoped memory for tpu_custom_call.1']
    #allocation10 [shape = 'u8[16384]{0}', space=vmem, size = 0x4000, scoped, tag = 'output window, operand 0']
    %10 = vsyncpa [#allocation3], 0
    %s11 = scalar_lea.sflag [#allocation3], 1
    %12 = vsyncpa %s11, 0
    %13 = vsyncpa [#allocation6], 0
    %14 = vsyncpa [#allocation9], 0
    %15 = vsyncpa [#allocation4], 0
    %s16 = scalar_lea.sflag [#allocation4], 1
    %17 = vsyncpa %s16, 0
    loop: start=0, step=1, limit=6
    $region2: #{tpu_custom_call.1} parent=1 // loop_pre_header
      _
    $region3: #{tpu_custom_call.1} parent=1 // loop_header
      %s19 = sphi 0, %s23
      %p20 = scmp.ge.s32.totalorder %s19, 6
      %s29 = sphi 0, %s31
      %s32 = sphi 0, %s29
      %s33 = sphi 0, %s32
      %s49 = sphi 0, %s33
      %s53 = sphi 0, %s53
      %s55 = sphi 0, %s53
      %s56 = sphi 0, %s55
      %s70 = sphi 0, %s56
      %s74 = sphi 0, %s74
      %s76 = sphi 0, %s74
      %s77 = sphi 0, %s76
      %s91 = sphi 0, %s77
      %s95 = sphi 0, %s95
      %s97 = sphi 0, %s95
      %s98 = sphi 0, %s97
      %s112 = sphi 0, %s98
      %s116 = sphi 0, %s116
      %s118 = sphi 0, %s116
      %s119 = sphi 0, %s118
      %s133 = sphi 0, %s119
      %s139 = sphi 0, %s141
      %s142 = sphi 0, %s139
      %s143 = sphi 0, %s142
      %s159 = sphi 0, %s143
    $region4: #{tpu_custom_call.1} parent=1 // loop_header_branch
      %22 = sbr.rel (%p20) target = $region8
    $region5: #{tpu_custom_call.1} parent=1 // loop_body
      %s24 = ssub.s32 %s19, 1
      %s25 = ssub.s32 %s19, 2
      %s26 = sadd.s32 %s19, 1
      %s27 = ssub.s32 %s19, %s26
      %p28 = scmp.eq.s32.totalorder %s27, 0
      %s30 = sadd.s32 %s29, 1
      %s31 = scalar_select %p28, %s29, %s30
      %p34 = pneg %p28
      %p35 = scmp.eq.s32.totalorder %s19, 3
      %p36 = por %p34, %p35
      %p37 = scmp.ne.s32.totalorder %s29, %s32
      %p38 = scmp.eq.s32.totalorder %s19, 0
      %p39 = por %p37, %p38
      %p40 = scmp.ne.s32.totalorder %s29, %s32
      %p41 = scmp.eq.s32.totalorder %s24, 3
      %p42 = por %p40, %p41
      %p43 = scmp.ne.s32.totalorder %s32, %s33
      %p44 = scmp.eq.s32.totalorder %s24, 0
      %p45 = por %p43, %p44
      %p46 = scmp.ne.s32.totalorder %s32, %s33
      %p47 = scmp.eq.s32.totalorder %s25, 3
      %p48 = por %p46, %p47
      %p50 = scmp.ne.s32.totalorder %s33, %s49
      %p51 = scmp.eq.s32.totalorder %s25, 0
      %p52 = por %p50, %p51
      %s54 = sadd.s32 %s53, 1
      %p57 = scmp.eq.s32.totalorder %s19, 3
      %p58 = scmp.ne.s32.totalorder %s53, %s55
      %p59 = scmp.eq.s32.totalorder %s19, 0
      %p60 = por %p58, %p59
      %p61 = scmp.ne.s32.totalorder %s53, %s55
      %p62 = scmp.eq.s32.totalorder %s24, 3
      %p63 = por %p61, %p62
      %p64 = scmp.ne.s32.totalorder %s55, %s56
      %p65 = scmp.eq.s32.totalorder %s24, 0
      %p66 = por %p64, %p65
      %p67 = scmp.ne.s32.totalorder %s55, %s56
      %p68 = scmp.eq.s32.totalorder %s25, 3
      %p69 = por %p67, %p68
      %p71 = scmp.ne.s32.totalorder %s56, %s70
      %p72 = scmp.eq.s32.totalorder %s25, 0
      %p73 = por %p71, %p72
      %s75 = sadd.s32 %s74, 1
      %p78 = scmp.eq.s32.totalorder %s19, 3
      %p79 = scmp.ne.s32.totalorder %s74, %s76
      %p80 = scmp.eq.s32.totalorder %s19, 0
      %p81 = por %p79, %p80
      %p82 = scmp.ne.s32.totalorder %s74, %s76
      %p83 = scmp.eq.s32.totalorder %s24, 3
      %p84 = por %p82, %p83
      %p85 = scmp.ne.s32.totalorder %s76, %s77
      %p86 = scmp.eq.s32.totalorder %s24, 0
      %p87 = por %p85, %p86
      %p88 = scmp.ne.s32.totalorder %s76, %s77
      %p89 = scmp.eq.s32.totalorder %s25, 3
      %p90 = por %p88, %p89
      %p92 = scmp.ne.s32.totalorder %s77, %s91
      %p93 = scmp.eq.s32.totalorder %s25, 0
      %p94 = por %p92, %p93
      %s96 = sadd.s32 %s95, 1
      %p99 = scmp.eq.s32.totalorder %s19, 3
      %p100 = scmp.ne.s32.totalorder %s95, %s97
      %p101 = scmp.eq.s32.totalorder %s19, 0
      %p102 = por %p100, %p101
      %p103 = scmp.ne.s32.totalorder %s95, %s97
      %p104 = scmp.eq.s32.totalorder %s24, 3
      %p105 = por %p103, %p104
      %p106 = scmp.ne.s32.totalorder %s97, %s98
      %p107 = scmp.eq.s32.totalorder %s24, 0
      %p108 = por %p106, %p107
      %p109 = scmp.ne.s32.totalorder %s97, %s98
      %p110 = scmp.eq.s32.totalorder %s25, 3
      %p111 = por %p109, %p110
      %p113 = scmp.ne.s32.totalorder %s98, %s112
      %p114 = scmp.eq.s32.totalorder %s25, 0
      %p115 = por %p113, %p114
      %s117 = sadd.s32 %s116, 1
      %p120 = scmp.eq.s32.totalorder %s19, 3
      %p121 = scmp.ne.s32.totalorder %s116, %s118
      %p122 = scmp.eq.s32.totalorder %s19, 0
      %p123 = por %p121, %p122
      %p124 = scmp.ne.s32.totalorder %s116, %s118
      %p125 = scmp.eq.s32.totalorder %s24, 3
      %p126 = por %p124, %p125
      %p127 = scmp.ne.s32.totalorder %s118, %s119
      %p128 = scmp.eq.s32.totalorder %s24, 0
      %p129 = por %p127, %p128
      %p130 = scmp.ne.s32.totalorder %s118, %s119
      %p131 = scmp.eq.s32.totalorder %s25, 3
      %p132 = por %p130, %p131
      %p134 = scmp.ne.s32.totalorder %s119, %s133
      %p135 = scmp.eq.s32.totalorder %s25, 0
      %p136 = por %p134, %p135
      %s137 = ssub.s32 %s19, %s26
      %p138 = scmp.eq.s32.totalorder %s137, 0
      %s140 = sadd.s32 %s139, 1
      %s141 = scalar_select %p138, %s139, %s140
      %p144 = pneg %p138
      %p145 = scmp.eq.s32.totalorder %s19, 3
      %p146 = por %p144, %p145
      %p147 = scmp.ne.s32.totalorder %s139, %s142
      %p148 = scmp.eq.s32.totalorder %s19, 0
      %p149 = por %p147, %p148
      %p150 = scmp.ne.s32.totalorder %s139, %s142
      %p151 = scmp.eq.s32.totalorder %s24, 3
      %p152 = por %p150, %p151
      %p153 = scmp.ne.s32.totalorder %s142, %s143
      %p154 = scmp.eq.s32.totalorder %s24, 0
      %p155 = por %p153, %p154
      %p156 = scmp.ne.s32.totalorder %s142, %s143
      %p157 = scmp.eq.s32.totalorder %s25, 3
      %p158 = por %p156, %p157
      %p160 = scmp.ne.s32.totalorder %s143, %s159
      %p161 = scmp.eq.s32.totalorder %s25, 0
      %p162 = por %p160, %p161
      %p163 = scmp.le.s32.totalorder 1, %s19
      %p164 = scmp.lt.s32.totalorder %s19, 5
      %p165 = pnand %p163, %p164
      %p166 = pneg %p165
      // Predicated region
      $region9: #{tpu_custom_call.1} parent=5 // pred_check
        _
      $region10: #{tpu_custom_call.1} parent=5 // pred_check_branch
        %168 = sbr.rel (%p165) target = $region12
      $region11: #{tpu_custom_call.1} parent=5 // pred_region
        %s169 = ssub.s32 %s19, 1
        // Predicated region
        $region13: #{tpu_custom_call.1} parent=11 // pred_check
          %p170 = pneg %p66
        $region14: #{tpu_custom_call.1} parent=11 // pred_check_branch
          %172 = sbr.rel (%p170) target = $region16
        $region15: #{tpu_custom_call.1} parent=11 // pred_region
          %s174 = ssub.s32 512, 512
          %175 = vsyncadd [#allocation6], %s174
          %s176 = sshll.u32 [#allocation5], 4
          %s177 = int_to_ptr.vmem [resolvable:$true] %s176
          %182 = dma.hbm_to_vmem [thread:$0]  %s1, 512, %s177, [#allocation6], 128, 128, 8
        $region16: #{tpu_custom_call.1} parent=11 // pred_fallthru
          _
        // Predicated region
        $region17: #{tpu_custom_call.1} parent=11 // pred_check
          %p183 = pneg %p87
        $region18: #{tpu_custom_call.1} parent=11 // pred_check_branch
          %185 = sbr.rel (%p183) target = $region20
        $region19: #{tpu_custom_call.1} parent=11 // pred_region
          %s187 = ssub.s32 512, 512
          %188 = vsyncadd [#allocation6], %s187
          %s189 = sshll.u32 [#allocation7], 4
          %s190 = int_to_ptr.vmem [resolvable:$true] %s189
          %195 = dma.hbm_to_vmem [thread:$0]  %s2, 512, %s190, [#allocation6], 128, 128, 8
        $region20: #{tpu_custom_call.1} parent=11 // pred_fallthru
          _
        // Predicated region
        $region21: #{tpu_custom_call.1} parent=11 // pred_check
          %p196 = pneg %p108
        $region22: #{tpu_custom_call.1} parent=11 // pred_check_branch
          %198 = sbr.rel (%p196) target = $region24
        $region23: #{tpu_custom_call.1} parent=11 // pred_region
          %s200 = ssub.s32 512, 512
          %201 = vsyncadd [#allocation9], %s200
          %s202 = sshll.u32 [#allocation8], 4
          %s203 = int_to_ptr.vmem [resolvable:$true] %s202
          %208 = dma.hbm_to_vmem [thread:$0]  %s3, 512, %s203, [#allocation9], 128, 128, 8
        $region24: #{tpu_custom_call.1} parent=11 // pred_fallthru
          _
        // Predicated region
        $region25: #{tpu_custom_call.1} parent=11 // pred_check
          %p209 = pneg %p129
        $region26: #{tpu_custom_call.1} parent=11 // pred_check_branch
          %211 = sbr.rel (%p209) target = $region28
        $region27: #{tpu_custom_call.1} parent=11 // pred_region
          _
        $region28: #{tpu_custom_call.1} parent=11 // pred_fallthru
          _
      $region12: #{tpu_custom_call.1} parent=5 // pred_fallthru
        _
      %p212 = scmp.lt.s32.totalorder %s19, 4
      // Predicated region
      $region29: #{tpu_custom_call.1} parent=5 // pred_check
        %p213 = pneg %p212
      $region30: #{tpu_custom_call.1} parent=5 // pred_check_branch
        %215 = sbr.rel (%p213) target = $region32
      $region31: #{tpu_custom_call.1} parent=5 // pred_region
        // Predicated region
        $region33: #{tpu_custom_call.1} parent=31 // pred_check
          %p216 = pneg %p39
        $region34: #{tpu_custom_call.1} parent=31 // pred_check_branch
          %218 = sbr.rel (%p216) target = $region36
        $region35: #{tpu_custom_call.1} parent=31 // pred_region
          %s219 = sand.u32 %s29, 1
          %s220 = scalar_lea.sflag [#allocation3], %s219
          %s221 = sand.u32 %s29, 1
          %s222 = smul.addr %s221, 16
          %s223 = scalar_lea.vmem [#allocation2], %s222
          %s224 = smul.u32 4, %s19
          %s226 = ssub.s32 256, 256
          %227 = vsyncadd %s220, %s226
          %s228 = smul.addr %s224, 64
          %s229 = scalar_lea.hbm %s0, %s228
          %s231 = sshll.u32 %s223, 4
          %s232 = int_to_ptr.vmem [resolvable:$true] %s231
          %234 = dma.hbm_to_vmem [thread:$0]  %s229, 256, %s232, %s220
        $region36: #{tpu_custom_call.1} parent=31 // pred_fallthru
          _
      $region32: #{tpu_custom_call.1} parent=5 // pred_fallthru
        _
      %p235 = scmp.le.s32.totalorder 1, %s19
      %p236 = scmp.lt.s32.totalorder %s19, 5
      %p237 = pnand %p235, %p236
      %p238 = pneg %p237
      // Predicated region
      $region37: #{tpu_custom_call.1} parent=5 // pred_check
        _
      $region38: #{tpu_custom_call.1} parent=5 // pred_check_branch
        %240 = sbr.rel (%p237) target = $region40
      $region39: #{tpu_custom_call.1} parent=5 // pred_region
        %s241 = ssub.s32 %s19, 1
        %s242 = sand.u32 %s32, 1
        %s243 = scalar_lea.sflag [#allocation3], %s242
        %s244 = sand.u32 %s32, 1
        %s245 = smul.addr %s244, 16
        %s246 = scalar_lea.vmem [#allocation2], %s245
        // Predicated region
        $region41: #{tpu_custom_call.1} parent=39 // pred_check
          %p247 = pneg %p45
        $region42: #{tpu_custom_call.1} parent=39 // pred_check_branch
          %249 = sbr.rel (%p247) target = $region44
        $region43: #{tpu_custom_call.1} parent=39 // pred_region
          %250 = dma.done %s243, 256
        $region44: #{tpu_custom_call.1} parent=39 // pred_fallthru
          _
        // Predicated region
        $region45: #{tpu_custom_call.1} parent=39 // pred_check
          %p251 = pneg %p66
        $region46: #{tpu_custom_call.1} parent=39 // pred_check_branch
          %253 = sbr.rel (%p251) target = $region48
        $region47: #{tpu_custom_call.1} parent=39 // pred_region
          %254 = dma.done [#allocation6], 512
        $region48: #{tpu_custom_call.1} parent=39 // pred_fallthru
          _
        // Predicated region
        $region49: #{tpu_custom_call.1} parent=39 // pred_check
          %p255 = pneg %p87
        $region50: #{tpu_custom_call.1} parent=39 // pred_check_branch
          %257 = sbr.rel (%p255) target = $region52
        $region51: #{tpu_custom_call.1} parent=39 // pred_region
          %258 = dma.done [#allocation6], 512
        $region52: #{tpu_custom_call.1} parent=39 // pred_fallthru
          _
        // Predicated region
        $region53: #{tpu_custom_call.1} parent=39 // pred_check
          %p259 = pneg %p108
        $region54: #{tpu_custom_call.1} parent=39 // pred_check_branch
          %261 = sbr.rel (%p259) target = $region56
        $region55: #{tpu_custom_call.1} parent=39 // pred_region
          %262 = dma.done [#allocation9], 512
        $region56: #{tpu_custom_call.1} parent=39 // pred_fallthru
          _
        %s263 = sand.u32 %s32, 1
        %s264 = scalar_lea.sflag [#allocation3], %s263
        %s265 = sand.u32 %s32, 1
        %s266 = smul.addr %s265, 16
        %s267 = scalar_lea.vmem [#allocation2], %s266
        %p268 = pneg %p45
        %p269 = pneg %p42
        %p270 = pneg %p66
        %p271 = pneg %p63
        %p272 = pneg %p87
        %p273 = pneg %p84
        %p274 = pneg %p108
        %p275 = pneg %p105
        %p276 = pneg %p129
        %p277 = pneg %p126
        %p278 = pneg %p155
        %p279 = pneg %p152
        %s280 = sand.u32 %s142, 1
        %s281 = scalar_lea.sflag [#allocation4], %s280
        %s282 = sand.u32 %s142, 1
        %s283 = smul.addr %s282, 16
        %s284 = scalar_lea.vmem [#allocation10], %s283
        %s285 = smul.u32 4, %s24
        %s286 = smul.u32 4, %s24
        %v287 = vld [vmem:[%s246] sm:$0x77]
        %v288 = vld [vmem:[%s246 + $0x8] sm:$0x77]
        %v289 = vmul.f32 %v287, 3.1415927
        %v290 = vmul.f32 %v288, 3.1415927
        %v291 = vand.u32 2147483647, %v289
        %vm292 = vcmp.le.f32.partialorder %v291, 0.7853982
        %vm293 = vcmp.lt.s32.totalorder %v289, 0
        %v294 = vand.u32 %v289, 2139095040
        %v295 = vshrl.u32 %v294, 23
        %v296 = vsub.s32 %v295, 127
        %v297 = vand.u32 2147483647, %v289
        %v298 = vand.u32 %v297, 8388607
        %v299 = vor.u32 %v298, 8388608
        %v300 = vsub.s32 0, %v299
        %v301 = vadd.s32 %v296, 1
        %vm302 = vcmp.gt.s32.totalorder %v301, 0
        %v303 = vsel %vm302, %v301, 0
        %v304 = vshrl.u32 %v303, 5
        %v305 = vand.u32 %v303, 31
        %v306 = vsub.s32 32, %v305
        %v307 = vshrl.u32 683565275, %v306
        %v308 = vshll.u32 683565275, %v305
        %v309 = vshrl.u32 2475754826, %v306
        %v310 = vor.u32 %v308, %v309
        %v311 = vshll.u32 2475754826, %v305
        %v312 = vshrl.u32 2131351028, %v306
        %v313 = vor.u32 %v311, %v312
        %v314 = vshll.u32 2131351028, %v305
        %v315 = vshrl.u32 2102212464, %v306
        %v316 = vor.u32 %v314, %v315
        %v317 = vshll.u32 2102212464, %v305
        %v318 = vshrl.u32 920167782, %v306
        %v319 = vor.u32 %v317, %v318
        %v320 = vshll.u32 920167782, %v305
        %v321 = vshrl.u32 1326507024, %v306
        %v322 = vor.u32 %v320, %v321
        %vm323 = vcmp.lt.s32.totalorder %v304, 1
        %vm324 = vcmp.lt.s32.totalorder %v304, 2
        %vm325 = vcmp.lt.s32.totalorder %v304, 3
        %vm326 = vcmp.lt.s32.totalorder %v304, 4
        %v327 = vsel %vm323, %v307, %v310
        %v328 = vsel %vm326, %v316, 2102212464
        %v329 = vsel %vm325, %v313, %v328
        %v330 = vsel %vm324, %v327, %v329
        %v331 = vsel %vm323, %v310, %v313
        %v332 = vsel %vm326, %v319, 920167782
        %v333 = vsel %vm325, %v316, %v332
        %v334 = vsel %vm324, %v331, %v333
        %v335 = vsel %vm323, %v313, %v316
        %v336 = vsel %vm326, %v322, 1326507024
        %v337 = vsel %vm325, %v319, %v336
        %v338 = vsel %vm324, %v335, %v337
        %v339 = vshll.u32 %v299, 8
        %v340 = vmul.u32.u64.compose %v339, %v338
        %v341 = vextract.low.u32 %v340
        %v342 = vextract.high.u32 %v340
        %v343 = vmul.u32.u64.compose %v339, %v334
        %v344 = vextract.low.u32 %v343
        %v345 = vextract.high.u32 %v343
        %v346 = vmul.u32 %v339, %v330
        %v347 = vadd.s32 %v342, %v344
        %vm348 = vc.u32 %v342, %v344
        %v349 = vadd.s32 %v345, 1
        %v350 = vsel %vm348, %v349, %v345
        %v351 = vadd.s32 %v346, %v350
        %v352 = vadd.s32 %v351, 536870912
        %v353 = vshrl.u32 %v352, 30
        %v354 = vshll.u32 %v353, 30
        %v355 = vsub.s32 %v351, %v354
        %vm356 = vcmp.lt.s32.totalorder %v355, 0
        %v357 = vsub.s32 0, %v355
        %v358 = vsel %vm356, %v357, %v355
        %v359 = vclz %v358
        %v360 = vsub.s32 %v359, 2
        %vm361 = vcmp.gt.s32.totalorder 0, %v360
        %v362 = vsel %vm361, 0, %v360
        %v363 = vsub.s32 32, %v362
        %v364 = vshll.u32 %v355, %v362
        %v365 = vshrl.u32 %v347, %v363
        %v366 = vor.u32 %v364, %v365
        %v367 = vsub.s32 4294967266, %v362
        %v368 = vadd.s32 %v367, 127
        %v369 = vshll.u32 %v368, 23
        %v370 = vor.u32 4788187, %v369
        %v371 = vand.u32 2147483647, %v370
        %v373 = vcvt.s32.f32 %v366
        %v374 = vmul.f32 %v373, %v371
        %v375 = vxor.u32 %v374, 2147483648
        %v376 = vsel %vm293, %v375, %v374
        %v377 = vsub.s32 4, %v353
        %v378 = vsel %vm293, %v377, %v353
        %v379 = vsel %vm292, %v289, %v376
        %v380 = vsel %vm292, 0, %v378
        %v381 = vcosq.f32.pop %v379
        %v382 = vsinq.f32.pop %v379
        %vm383 = vweird.f32 %v289
        %v384 = vand.u32 %v380, 3
        %vm385 = vcmp.lt.s32.totalorder %v384, 2
        %vm386 = vcmp.eq.s32.totalorder %v384, 0
        %v387 = vxor.u32 %v382, 2147483648
        %v388 = vsel %vm386, %v381, %v387
        %vm389 = vcmp.eq.s32.totalorder %v384, 2
        %v390 = vxor.u32 %v381, 2147483648
        %v391 = vsel %vm389, %v390, %v382
        %v392 = vsel %vm385, %v388, %v391
        %v393 = vsel %vm383, nan, %v392
        %v394 = vand.u32 2147483647, %v290
        %vm395 = vcmp.le.f32.partialorder %v394, 0.7853982
        %vm396 = vcmp.lt.s32.totalorder %v290, 0
        %v397 = vand.u32 %v290, 2139095040
        %v398 = vshrl.u32 %v397, 23
        %v399 = vsub.s32 %v398, 127
        %v400 = vand.u32 2147483647, %v290
        %v401 = vand.u32 %v400, 8388607
        %v402 = vor.u32 %v401, 8388608
        %v403 = vsub.s32 0, %v402
        %v404 = vadd.s32 %v399, 1
        %vm405 = vcmp.gt.s32.totalorder %v404, 0
        %v406 = vsel %vm405, %v404, 0
        %v407 = vshrl.u32 %v406, 5
        %v408 = vand.u32 %v406, 31
        %v409 = vsub.s32 32, %v408
        %v410 = vshrl.u32 683565275, %v409
        %v411 = vshll.u32 683565275, %v408
        %v412 = vshrl.u32 2475754826, %v409
        %v413 = vor.u32 %v411, %v412
        %v414 = vshll.u32 2475754826, %v408
        %v415 = vshrl.u32 2131351028, %v409
        %v416 = vor.u32 %v414, %v415
        %v417 = vshll.u32 2131351028, %v408
        %v418 = vshrl.u32 2102212464, %v409
        %v419 = vor.u32 %v417, %v418
        %v420 = vshll.u32 2102212464, %v408
        %v421 = vshrl.u32 920167782, %v409
        %v422 = vor.u32 %v420, %v421
        %v423 = vshll.u32 920167782, %v408
        %v424 = vshrl.u32 1326507024, %v409
        %v425 = vor.u32 %v423, %v424
        %vm426 = vcmp.lt.s32.totalorder %v407, 1
        %vm427 = vcmp.lt.s32.totalorder %v407, 2
        %vm428 = vcmp.lt.s32.totalorder %v407, 3
        %vm429 = vcmp.lt.s32.totalorder %v407, 4
        %v430 = vsel %vm426, %v410, %v413
        %v431 = vsel %vm429, %v419, 2102212464
        %v432 = vsel %vm428, %v416, %v431
        %v433 = vsel %vm427, %v430, %v432
        %v434 = vsel %vm426, %v413, %v416
        %v435 = vsel %vm429, %v422, 920167782
        %v436 = vsel %vm428, %v419, %v435
        %v437 = vsel %vm427, %v434, %v436
        %v438 = vsel %vm426, %v416, %v419
        %v439 = vsel %vm429, %v425, 1326507024
        %v440 = vsel %vm428, %v422, %v439
        %v441 = vsel %vm427, %v438, %v440
        %v442 = vshll.u32 %v402, 8
        %v443 = vmul.u32.u64.compose %v442, %v441
        %v444 = vextract.low.u32 %v443
        %v445 = vextract.high.u32 %v443
        %v446 = vmul.u32.u64.compose %v442, %v437
        %v447 = vextract.low.u32 %v446
        %v448 = vextract.high.u32 %v446
        %v449 = vmul.u32 %v442, %v433
        %v450 = vadd.s32 %v445, %v447
        %vm451 = vc.u32 %v445, %v447
        %v452 = vadd.s32 %v448, 1
        %v453 = vsel %vm451, %v452, %v448
        %v454 = vadd.s32 %v449, %v453
        %v455 = vadd.s32 %v454, 536870912
        %v456 = vshrl.u32 %v455, 30
        %v457 = vshll.u32 %v456, 30
        %v458 = vsub.s32 %v454, %v457
        %vm459 = vcmp.lt.s32.totalorder %v458, 0
        %v460 = vsub.s32 0, %v458
        %v461 = vsel %vm459, %v460, %v458
        %v462 = vclz %v461
        %v463 = vsub.s32 %v462, 2
        %vm464 = vcmp.gt.s32.totalorder 0, %v463
        %v465 = vsel %vm464, 0, %v463
        %v466 = vsub.s32 32, %v465
        %v467 = vshll.u32 %v458, %v465
        %v468 = vshrl.u32 %v450, %v466
        %v469 = vor.u32 %v467, %v468
        %v470 = vsub.s32 4294967266, %v465
        %v471 = vadd.s32 %v470, 127
        %v472 = vshll.u32 %v471, 23
        %v473 = vor.u32 4788187, %v472
        %v474 = vand.u32 2147483647, %v473
        %v476 = vcvt.s32.f32 %v469
        %v477 = vmul.f32 %v476, %v474
        %v478 = vxor.u32 %v477, 2147483648
        %v479 = vsel %vm396, %v478, %v477
        %v480 = vsub.s32 4, %v456
        %v481 = vsel %vm396, %v480, %v456
        %v482 = vsel %vm395, %v290, %v479
        %v483 = vsel %vm395, 0, %v481
        %v484 = vcosq.f32.pop %v482
        %v485 = vsinq.f32.pop %v482
        %vm486 = vweird.f32 %v290
        %v487 = vand.u32 %v483, 3
        %vm488 = vcmp.lt.s32.totalorder %v487, 2
        %vm489 = vcmp.eq.s32.totalorder %v487, 0
        %v490 = vxor.u32 %v485, 2147483648
        %v491 = vsel %vm489, %v484, %v490
        %vm492 = vcmp.eq.s32.totalorder %v487, 2
        %v493 = vxor.u32 %v484, 2147483648
        %v494 = vsel %vm492, %v493, %v485
        %v495 = vsel %vm488, %v491, %v494
        %v496 = vsel %vm486, nan, %v495
        %v497 = vand.u32 2147483647, %v289
        %vm498 = vcmp.le.f32.partialorder %v497, 0.7853982
        %vm499 = vcmp.lt.s32.totalorder %v289, 0
        %v500 = vand.u32 %v289, 2139095040
        %v501 = vshrl.u32 %v500, 23
        %v502 = vsub.s32 %v501, 127
        %v503 = vand.u32 2147483647, %v289
        %v504 = vand.u32 %v503, 8388607
        %v505 = vor.u32 %v504, 8388608
        %v506 = vsub.s32 0, %v505
        %v507 = vadd.s32 %v502, 1
        %vm508 = vcmp.gt.s32.totalorder %v507, 0
        %v509 = vsel %vm508, %v507, 0
        %v510 = vshrl.u32 %v509, 5
        %v511 = vand.u32 %v509, 31
        %v512 = vsub.s32 32, %v511
        %v513 = vshrl.u32 683565275, %v512
        %v514 = vshll.u32 683565275, %v511
        %v515 = vshrl.u32 2475754826, %v512
        %v516 = vor.u32 %v514, %v515
        %v517 = vshll.u32 2475754826, %v511
        %v518 = vshrl.u32 2131351028, %v512
        %v519 = vor.u32 %v517, %v518
        %v520 = vshll.u32 2131351028, %v511
        %v521 = vshrl.u32 2102212464, %v512
        %v522 = vor.u32 %v520, %v521
        %v523 = vshll.u32 2102212464, %v511
        %v524 = vshrl.u32 920167782, %v512
        %v525 = vor.u32 %v523, %v524
        %v526 = vshll.u32 920167782, %v511
        %v527 = vshrl.u32 1326507024, %v512
        %v528 = vor.u32 %v526, %v527
        %vm529 = vcmp.lt.s32.totalorder %v510, 1
        %vm530 = vcmp.lt.s32.totalorder %v510, 2
        %vm531 = vcmp.lt.s32.totalorder %v510, 3
        %vm532 = vcmp.lt.s32.totalorder %v510, 4
        %v533 = vsel %vm529, %v513, %v516
        %v534 = vsel %vm532, %v522, 2102212464
        %v535 = vsel %vm531, %v519, %v534
        %v536 = vsel %vm530, %v533, %v535
        %v537 = vsel %vm529, %v516, %v519
        %v538 = vsel %vm532, %v525, 920167782
        %v539 = vsel %vm531, %v522, %v538
        %v540 = vsel %vm530, %v537, %v539
        %v541 = vsel %vm529, %v519, %v522
        %v542 = vsel %vm532, %v528, 1326507024
        %v543 = vsel %vm531, %v525, %v542
        %v544 = vsel %vm530, %v541, %v543
        %v545 = vshll.u32 %v505, 8
        %v546 = vmul.u32.u64.compose %v545, %v544
        %v547 = vextract.low.u32 %v546
        %v548 = vextract.high.u32 %v546
        %v549 = vmul.u32.u64.compose %v545, %v540
        %v550 = vextract.low.u32 %v549
        %v551 = vextract.high.u32 %v549
        %v552 = vmul.u32 %v545, %v536
        %v553 = vadd.s32 %v548, %v550
        %vm554 = vc.u32 %v548, %v550
        %v555 = vadd.s32 %v551, 1
        %v556 = vsel %vm554, %v555, %v551
        %v557 = vadd.s32 %v552, %v556
        %v558 = vadd.s32 %v557, 536870912
        %v559 = vshrl.u32 %v558, 30
        %v560 = vshll.u32 %v559, 30
        %v561 = vsub.s32 %v557, %v560
        %vm562 = vcmp.lt.s32.totalorder %v561, 0
        %v563 = vsub.s32 0, %v561
        %v564 = vsel %vm562, %v563, %v561
        %v565 = vclz %v564
        %v566 = vsub.s32 %v565, 2
        %vm567 = vcmp.gt.s32.totalorder 0, %v566
        %v568 = vsel %vm567, 0, %v566
        %v569 = vsub.s32 32, %v568
        %v570 = vshll.u32 %v561, %v568
        %v571 = vshrl.u32 %v553, %v569
        %v572 = vor.u32 %v570, %v571
        %v573 = vsub.s32 4294967266, %v568
        %v574 = vadd.s32 %v573, 127
        %v575 = vshll.u32 %v574, 23
        %v576 = vor.u32 4788187, %v575
        %v577 = vand.u32 2147483647, %v576
        %v579 = vcvt.s32.f32 %v572
        %v580 = vmul.f32 %v579, %v577
        %v581 = vxor.u32 %v580, 2147483648
        %v582 = vsel %vm499, %v581, %v580
        %v583 = vsub.s32 4, %v559
        %v584 = vsel %vm499, %v583, %v559
        %v585 = vsel %vm498, %v289, %v582
        %v586 = vsel %vm498, 0, %v584
        %v587 = vcosq.f32.pop %v585
        %v588 = vsinq.f32.pop %v585
        %vm589 = vweird.f32 %v289
        %v590 = vadd.s32 %v586, 3
        %v591 = vand.u32 %v590, 3
        %vm592 = vcmp.lt.s32.totalorder %v591, 2
        %vm593 = vcmp.eq.s32.totalorder %v591, 0
        %v594 = vxor.u32 %v588, 2147483648
        %v595 = vsel %vm593, %v587, %v594
        %vm596 = vcmp.eq.s32.totalorder %v591, 2
        %v597 = vxor.u32 %v587, 2147483648
        %v598 = vsel %vm596, %v597, %v588
        %v599 = vsel %vm592, %v595, %v598
        %v600 = vsel %vm589, nan, %v599
        %v601 = vand.u32 2147483647, %v290
        %vm602 = vcmp.le.f32.partialorder %v601, 0.7853982
        %vm603 = vcmp.lt.s32.totalorder %v290, 0
        %v604 = vand.u32 %v290, 2139095040
        %v605 = vshrl.u32 %v604, 23
        %v606 = vsub.s32 %v605, 127
        %v607 = vand.u32 2147483647, %v290
        %v608 = vand.u32 %v607, 8388607
        %v609 = vor.u32 %v608, 8388608
        %v610 = vsub.s32 0, %v609
        %v611 = vadd.s32 %v606, 1
        %vm612 = vcmp.gt.s32.totalorder %v611, 0
        %v613 = vsel %vm612, %v611, 0
        %v614 = vshrl.u32 %v613, 5
        %v615 = vand.u32 %v613, 31
        %v616 = vsub.s32 32, %v615
        %v617 = vshrl.u32 683565275, %v616
        %v618 = vshll.u32 683565275, %v615
        %v619 = vshrl.u32 2475754826, %v616
        %v620 = vor.u32 %v618, %v619
        %v621 = vshll.u32 2475754826, %v615
        %v622 = vshrl.u32 2131351028, %v616
        %v623 = vor.u32 %v621, %v622
        %v624 = vshll.u32 2131351028, %v615
        %v625 = vshrl.u32 2102212464, %v616
        %v626 = vor.u32 %v624, %v625
        %v627 = vshll.u32 2102212464, %v615
        %v628 = vshrl.u32 920167782, %v616
        %v629 = vor.u32 %v627, %v628
        %v630 = vshll.u32 920167782, %v615
        %v631 = vshrl.u32 1326507024, %v616
        %v632 = vor.u32 %v630, %v631
        %vm633 = vcmp.lt.s32.totalorder %v614, 1
        %vm634 = vcmp.lt.s32.totalorder %v614, 2
        %vm635 = vcmp.lt.s32.totalorder %v614, 3
        %vm636 = vcmp.lt.s32.totalorder %v614, 4
        %v637 = vsel %vm633, %v617, %v620
        %v638 = vsel %vm636, %v626, 2102212464
        %v639 = vsel %vm635, %v623, %v638
        %v640 = vsel %vm634, %v637, %v639
        %v641 = vsel %vm633, %v620, %v623
        %v642 = vsel %vm636, %v629, 920167782
        %v643 = vsel %vm635, %v626, %v642
        %v644 = vsel %vm634, %v641, %v643
        %v645 = vsel %vm633, %v623, %v626
        %v646 = vsel %vm636, %v632, 1326507024
        %v647 = vsel %vm635, %v629, %v646
        %v648 = vsel %vm634, %v645, %v647
        %v649 = vshll.u32 %v609, 8
        %v650 = vmul.u32.u64.compose %v649, %v648
        %v651 = vextract.low.u32 %v650
        %v652 = vextract.high.u32 %v650
        %v653 = vmul.u32.u64.compose %v649, %v644
        %v654 = vextract.low.u32 %v653
        %v655 = vextract.high.u32 %v653
        %v656 = vmul.u32 %v649, %v640
        %v657 = vadd.s32 %v652, %v654
        %vm658 = vc.u32 %v652, %v654
        %v659 = vadd.s32 %v655, 1
        %v660 = vsel %vm658, %v659, %v655
        %v661 = vadd.s32 %v656, %v660
        %v662 = vadd.s32 %v661, 536870912
        %v663 = vshrl.u32 %v662, 30
        %v664 = vshll.u32 %v663, 30
        %v665 = vsub.s32 %v661, %v664
        %vm666 = vcmp.lt.s32.totalorder %v665, 0
        %v667 = vsub.s32 0, %v665
        %v668 = vsel %vm666, %v667, %v665
        %v669 = vclz %v668
        %v670 = vsub.s32 %v669, 2
        %vm671 = vcmp.gt.s32.totalorder 0, %v670
        %v672 = vsel %vm671, 0, %v670
        %v673 = vsub.s32 32, %v672
        %v674 = vshll.u32 %v665, %v672
        %v675 = vshrl.u32 %v657, %v673
        %v676 = vor.u32 %v674, %v675
        %v677 = vsub.s32 4294967266, %v672
        %v678 = vadd.s32 %v677, 127
        %v679 = vshll.u32 %v678, 23
        %v680 = vor.u32 4788187, %v679
        %v681 = vand.u32 2147483647, %v680
        %v683 = vcvt.s32.f32 %v676
        %v684 = vmul.f32 %v683, %v681
        %v685 = vxor.u32 %v684, 2147483648
        %v686 = vsel %vm603, %v685, %v684
        %v687 = vsub.s32 4, %v663
        %v688 = vsel %vm603, %v687, %v663
        %v689 = vsel %vm602, %v290, %v686
        %v690 = vsel %vm602, 0, %v688
        %v691 = vcosq.f32.pop %v689
        %v692 = vsinq.f32.pop %v689
        %vm693 = vweird.f32 %v290
        %v694 = vadd.s32 %v690, 3
        %v695 = vand.u32 %v694, 3
        %vm696 = vcmp.lt.s32.totalorder %v695, 2
        %vm697 = vcmp.eq.s32.totalorder %v695, 0
        %v698 = vxor.u32 %v692, 2147483648
        %v699 = vsel %vm697, %v691, %v698
        %vm700 = vcmp.eq.s32.totalorder %v695, 2
        %v701 = vxor.u32 %v691, 2147483648
        %v702 = vsel %vm700, %v701, %v692
        %v703 = vsel %vm696, %v699, %v702
        %v704 = vsel %vm693, nan, %v703
        %v705 = vmul.f32 %v393, 2.0
        %v706 = vmul.f32 %v496, 2.0
        %v707 = vmul.f32 %v705, %v393
        %v708 = vmul.f32 %v706, %v496
        %v709 = vsub.f32 %v707, 1.0
        %v710 = vsub.f32 %v708, 1.0
        %v711 = vmul.f32 %v600, 2.0
        %v712 = vmul.f32 %v704, 2.0
        %v713 = vmul.f32 %v711, %v393
        %v714 = vmul.f32 %v712, %v496
        %v715 = vmul.f32 %v709, 2.0
        %v716 = vmul.f32 %v710, 2.0
        %v717 = vmul.f32 %v715, %v709
        %v718 = vmul.f32 %v716, %v710
        %v719 = vsub.f32 %v717, 1.0
        %v720 = vsub.f32 %v718, 1.0
        %v721 = vmul.f32 %v713, 2.0
        %v722 = vmul.f32 %v714, 2.0
        %v723 = vmul.f32 %v721, %v709
        %v724 = vmul.f32 %v722, %v710
        %v725 = vmul.f32 %v719, 2.0
        %v726 = vmul.f32 %v720, 2.0
        %v727 = vmul.f32 %v725, %v719
        %v728 = vmul.f32 %v726, %v720
        %v729 = vsub.f32 %v727, 1.0
        %v730 = vsub.f32 %v728, 1.0
        %v731 = vmul.f32 %v723, 2.0
        %v732 = vmul.f32 %v724, 2.0
        %v733 = vmul.f32 %v731, %v719
        %v734 = vmul.f32 %v732, %v720
        %v737 = vcombine.high %v393, %v393
        %v738 = vcombine.high %v496, %v496
        %v743 = vcombine.high %v709, %v709
        %v744 = vcombine.high %v710, %v710
        %v745 = vrot.slane %v709, 5
        %v746 = vrot.slane %v743, 5
        %v747 = vrot.slane %v710, 5
        %v748 = vrot.slane %v744, 5
        %v755 = vcombine.high %v719, %v719
        %v756 = vcombine.high %v720, %v720
        %v757 = vrot.slane %v719, 2
        %v758 = vrot.slane %v755, 2
        %v759 = vrot.slane %v720, 2
        %v760 = vrot.slane %v756, 2
        %v767 = vcombine.high %v729, %v729
        %v768 = vcombine.high %v730, %v730
        %v769 = vrot.slane %v729, 7
        %v770 = vrot.slane %v767, 7
        %v771 = vrot.slane %v730, 7
        %v772 = vrot.slane %v768, 7
        %v779 = vcombine.low %v600, %v600
        %v780 = vcombine.low %v704, %v704
        %v785 = vcombine.high %v713, %v713
        %v786 = vcombine.high %v714, %v714
        %v787 = vrot.slane %v713, 1
        %v788 = vrot.slane %v785, 1
        %v789 = vrot.slane %v714, 1
        %v790 = vrot.slane %v786, 1
        %v797 = vcombine.high %v723, %v723
        %v798 = vcombine.high %v724, %v724
        %v799 = vrot.slane %v723, 6
        %v800 = vrot.slane %v797, 6
        %v801 = vrot.slane %v724, 6
        %v802 = vrot.slane %v798, 6
        %v809 = vcombine.high %v733, %v733
        %v810 = vcombine.high %v734, %v734
        %v811 = vrot.slane %v733, 3
        %v812 = vrot.slane %v809, 3
        %v813 = vrot.slane %v734, 3
        %v814 = vrot.slane %v810, 3
        %v821 = vcombine.high %v287, %v287
        %v822 = vcombine.high %v288, %v288
        %vm823 = vcmask 1042432
        %v824 = vsel %vm823, %v393, %v745
        %v825 = vsel %vm823, %v737, %v746
        %v826 = vsel %vm823, %v496, %v747
        %v827 = vsel %vm823, %v738, %v748
        %vm828 = vcmask 1045504
        %v829 = vsel %vm828, %v824, %v757
        %v830 = vsel %vm828, %v825, %v758
        %v831 = vsel %vm828, %v826, %v759
        %v832 = vsel %vm828, %v827, %v760
        %vm833 = vcmask 1040384
        %v834 = vsel %vm833, %v757, %v769
        %v835 = vsel %vm833, %v758, %v770
        %v836 = vsel %vm833, %v759, %v771
        %v837 = vsel %vm833, %v760, %v772
        %vm838 = vcmask 1043456
        %v839 = vsel %vm838, %v834, %v779
        %v840 = vsel %vm838, %v835, %v600
        %v841 = vsel %vm838, %v836, %v780
        %v842 = vsel %vm838, %v837, %v704
        %vm843 = vcmask 1046528
        %v844 = vsel %vm843, %v839, %v787
        %v845 = vsel %vm843, %v840, %v788
        %v846 = vsel %vm843, %v841, %v789
        %v847 = vsel %vm843, %v842, %v790
        %vm848 = vcmask 1041408
        %v849 = vsel %vm848, %v787, %v799
        %v850 = vsel %vm848, %v788, %v800
        %v851 = vsel %vm848, %v789, %v801
        %v852 = vsel %vm848, %v790, %v802
        %vm853 = vcmask 1044480
        %v854 = vsel %vm853, %v849, %v811
        %v855 = vsel %vm853, %v850, %v812
        %v856 = vsel %vm853, %v851, %v813
        %v857 = vsel %vm853, %v852, %v814
        %v858 = vld [vmem:[#allocation5] sm:$0xff]
        %v859 = vld [vmem:[#allocation5 + $0x8] sm:$0xff]
        %v860 = vld [vmem:[#allocation5 + $0x10] sm:$0xff]
        %v861 = vld [vmem:[#allocation5 + $0x18] sm:$0xff]
        %863 = vset.pattern.permute.xlu0 27
        %864 = vperm.xlu0 %863, %v858
        %v865 = vpop.permute.xlu0 %864
        %868 = vset.pattern.permute.xlu0 27
        %869 = vperm.xlu0 %868, %v859
        %v870 = vpop.permute.xlu0 %869
        %873 = vset.pattern.permute.xlu0 27
        %874 = vperm.xlu0 %873, %v860
        %v875 = vpop.permute.xlu0 %874
        %878 = vset.pattern.permute.xlu0 27
        %879 = vperm.xlu0 %878, %v861
        %v880 = vpop.permute.xlu0 %879
        %vm882 = vcmask 220160
        %v883 = vsel %vm882, %v858, 0
        %v885 = vsel %vm882, %v859, 0
        %v887 = vsel %vm882, %v860, 0
        %v889 = vsel %vm882, %v861, 0
        %v891 = vsel %vm823, %v287, 0
        %v893 = vsel %vm823, %v821, 0
        %v895 = vsel %vm823, %v288, 0
        %v897 = vsel %vm823, %v822, 0
        %899 = vmatprep.subr.mxu0 %v830
        %900 = vmatpush1.msra.mxu0 %v829
        %901 = vmatprep.subr.mxu0 %v845
        %902 = vmatpush1.msra.mxu0 %v844
        %903 = vmatprep.subr.mxu0 %v855
        %904 = vmatpush1.msra.mxu0 %v854
        %905 = vmatprep.subr.mxu0 %v893
        %906 = vmatpush1.msra.mxu0 %v891
        %907 = vmatprep.subr.mxu0 0.0
        %908 = vmatpush1.msra.mxu0 0.0
        %909 = vmatprep.subr.mxu0 0.0
        %910 = vmatpush1.msra.mxu0 0.0
        %911 = vmatprep.subr.mxu0 0.0
        %912 = vmatpush1.msra.mxu0 0.0
        %913 = vmatprep.subr.mxu0 0.0
        %914 = vmatpush1.msra.mxu0 0.0
        %915 = vmatprep.subr.mxu0 0.0
        %916 = vmatpush1.msra.mxu0 0.0
        %917 = vmatprep.subr.mxu0 0.0
        %918 = vmatpush1.msra.mxu0 0.0
        %919 = vmatprep.subr.mxu0 0.0
        %920 = vmatpush1.msra.mxu0 0.0
        %921 = vmatprep.subr.mxu0 0.0
        %922 = vmatpush1.msra.mxu0 0.0
        %923 = vmatprep.subr.mxu0 0.0
        %924 = vmatpush1.msra.mxu0 0.0
        %925 = vmatprep.subr.mxu0 0.0
        %926 = vmatpush1.msra.mxu0 0.0
        %927 = vmatprep.subr.mxu0 0.0
        %928 = vmatpush1.msra.mxu0 0.0
        %929 = vmatprep.subr.mxu0 0.0
        %930 = vmatpush1.msra.mxu0 0.0
        %931 = vmatprep.subr.mxu0 0.0
        %932 = vmatpush1.msra.mxu0 0.0
        %933 = vmatprep.subr.mxu0 0.0
        %934 = vmatpush1.msra.mxu0 0.0
        %935 = vmatprep.subr.mxu0 0.0
        %936 = vmatpush1.msra.mxu0 0.0
        %937 = vmatprep.subr.mxu0 0.0
        %938 = vmatpush1.msra.mxu0 0.0
        %939 = vmatprep.subr.mxu0 0.0
        %940 = vmatpush1.msra.mxu0 0.0
        %941 = vmatprep.subr.mxu0 0.0
        %942 = vmatpush1.msra.mxu0 0.0
        %943 = vmatprep.subr.mxu0 0.0
        %944 = vmatpush1.msra.mxu0 0.0
        %945 = vmatprep.subr.mxu0 0.0
        %946 = vmatpush1.msra.mxu0 0.0
        %947 = vmatprep.subr.mxu0 0.0
        %948 = vmatpush1.msra.mxu0 0.0
        %949 = vmatprep.subr.mxu0 0.0
        %950 = vmatpush1.msra.mxu0 0.0
        %951 = vmatprep.subr.mxu0 0.0
        %952 = vmatpush1.msra.mxu0 0.0
        %953 = vmatprep.subr.mxu0 0.0
        %954 = vmatpush1.msra.mxu0 0.0
        %955 = vmatprep.subr.mxu0 0.0
        %956 = vmatpush1.msra.mxu0 0.0
        %957 = vmatprep.subr.mxu0 0.0
        %958 = vmatpush1.msra.mxu0 0.0
        %959 = vmatprep.subr.mxu0 0.0
        %960 = vmatpush1.msra.mxu0 0.0
        %961 = vmatprep.subr.mxu0 0.0
        %962 = vmatpush1.msra.mxu0 0.0
        %963 = vmatprep.mubr.f32.mxu0 0.0
        %964 = vmatmul.mubr.f32.gmra.mrb[0].mxu0 %v883
        %v965 = vpop.f32.mrb[0].mxu0
        %v966 = vadd.f32 %v865, %v965
        %v967 = vpop.f32.mrb[0].mxu0
        %v968 = vadd.f32 %v865, %v967
        %969 = vmatprep.mubr.f32.mxu0 0.0
        %970 = vmatmul.mubr.f32.gmra.mrb[0].mxu0 %v885
        %v971 = vpop.f32.mrb[0].mxu0
        %v972 = vadd.f32 %v870, %v971
        %v973 = vpop.f32.mrb[0].mxu0
        %v974 = vadd.f32 %v870, %v973
        %975 = vmatprep.mubr.f32.mxu0 0.0
        %976 = vmatmul.mubr.f32.gmra.mrb[0].mxu0 %v887
        %v977 = vpop.f32.mrb[0].mxu0
        %v978 = vadd.f32 %v875, %v977
        %v979 = vpop.f32.mrb[0].mxu0
        %v980 = vadd.f32 %v875, %v979
        %981 = vmatprep.mubr.f32.mxu0 0.0
        %982 = vmatmul.mubr.f32.gmra.mrb[0].mxu0 %v889
        %v983 = vpop.f32.mrb[0].mxu0
        %v984 = vadd.f32 %v880, %v983
        %v985 = vpop.f32.mrb[0].mxu0
        %v986 = vadd.f32 %v880, %v985
        %987 = vdwg.mxu0
        %988 = vmatprep.subr.mxu0 %v832
        %989 = vmatpush1.msra.mxu0 %v831
        %990 = vmatprep.subr.mxu0 %v847
        %991 = vmatpush1.msra.mxu0 %v846
        %992 = vmatprep.subr.mxu0 %v857
        %993 = vmatpush1.msra.mxu0 %v856
        %994 = vmatprep.subr.mxu0 %v897
        %995 = vmatpush1.msra.mxu0 %v895
        %996 = vmatprep.subr.mxu0 0.0
        %997 = vmatpush1.msra.mxu0 0.0
        %998 = vmatprep.subr.mxu0 0.0
        %999 = vmatpush1.msra.mxu0 0.0
        %1000 = vmatprep.subr.mxu0 0.0
        %1001 = vmatpush1.msra.mxu0 0.0
        %1002 = vmatprep.subr.mxu0 0.0
        %1003 = vmatpush1.msra.mxu0 0.0
        %1004 = vmatprep.subr.mxu0 0.0
        %1005 = vmatpush1.msra.mxu0 0.0
        %1006 = vmatprep.subr.mxu0 0.0
        %1007 = vmatpush1.msra.mxu0 0.0
        %1008 = vmatprep.subr.mxu0 0.0
        %1009 = vmatpush1.msra.mxu0 0.0
        %1010 = vmatprep.subr.mxu0 0.0
        %1011 = vmatpush1.msra.mxu0 0.0
        %1012 = vmatprep.subr.mxu0 0.0
        %1013 = vmatpush1.msra.mxu0 0.0
        %1014 = vmatprep.subr.mxu0 0.0
        %1015 = vmatpush1.msra.mxu0 0.0
        %1016 = vmatprep.subr.mxu0 0.0
        %1017 = vmatpush1.msra.mxu0 0.0
        %1018 = vmatprep.subr.mxu0 0.0
        %1019 = vmatpush1.msra.mxu0 0.0
        %1020 = vmatprep.subr.mxu0 0.0
        %1021 = vmatpush1.msra.mxu0 0.0
        %1022 = vmatprep.subr.mxu0 0.0
        %1023 = vmatpush1.msra.mxu0 0.0
        %1024 = vmatprep.subr.mxu0 0.0
        %1025 = vmatpush1.msra.mxu0 0.0
        %1026 = vmatprep.subr.mxu0 0.0
        %1027 = vmatpush1.msra.mxu0 0.0
        %1028 = vmatprep.subr.mxu0 0.0
        %1029 = vmatpush1.msra.mxu0 0.0
        %1030 = vmatprep.subr.mxu0 0.0
        %1031 = vmatpush1.msra.mxu0 0.0
        %1032 = vmatprep.subr.mxu0 0.0
        %1033 = vmatpush1.msra.mxu0 0.0
        %1034 = vmatprep.subr.mxu0 0.0
        %1035 = vmatpush1.msra.mxu0 0.0
        %1036 = vmatprep.subr.mxu0 0.0
        %1037 = vmatpush1.msra.mxu0 0.0
        %1038 = vmatprep.subr.mxu0 0.0
        %1039 = vmatpush1.msra.mxu0 0.0
        %1040 = vmatprep.subr.mxu0 0.0
        %1041 = vmatpush1.msra.mxu0 0.0
        %1042 = vmatprep.subr.mxu0 0.0
        %1043 = vmatpush1.msra.mxu0 0.0
        %1044 = vmatprep.subr.mxu0 0.0
        %1045 = vmatpush1.msra.mxu0 0.0
        %1046 = vmatprep.subr.mxu0 0.0
        %1047 = vmatpush1.msra.mxu0 0.0
        %1048 = vmatprep.subr.mxu0 0.0
        %1049 = vmatpush1.msra.mxu0 0.0
        %1050 = vmatprep.subr.mxu0 0.0
        %1051 = vmatpush1.msra.mxu0 0.0
        %1052 = vmatprep.mubr.f32.mxu0 0.0
        %1053 = vmatmul.mubr.f32.gmra.mrb[0].mxu0 %v883
        %v1054 = vpop.f32.mrb[0].mxu0
        %v1055 = vadd.f32 %v865, %v1054
        %v1056 = vpop.f32.mrb[0].mxu0
        %v1057 = vadd.f32 %v865, %v1056
        %1058 = vmatprep.mubr.f32.mxu0 0.0
        %1059 = vmatmul.mubr.f32.gmra.mrb[0].mxu0 %v885
        %v1060 = vpop.f32.mrb[0].mxu0
        %v1061 = vadd.f32 %v870, %v1060
        %v1062 = vpop.f32.mrb[0].mxu0
        %v1063 = vadd.f32 %v870, %v1062
        %1064 = vmatprep.mubr.f32.mxu0 0.0
        %1065 = vmatmul.mubr.f32.gmra.mrb[0].mxu0 %v887
        %v1066 = vpop.f32.mrb[0].mxu0
        %v1067 = vadd.f32 %v875, %v1066
        %v1068 = vpop.f32.mrb[0].mxu0
        %v1069 = vadd.f32 %v875, %v1068
        %1070 = vmatprep.mubr.f32.mxu0 0.0
        %1071 = vmatmul.mubr.f32.gmra.mrb[0].mxu0 %v889
        %v1072 = vpop.f32.mrb[0].mxu0
        %v1073 = vadd.f32 %v880, %v1072
        %v1074 = vpop.f32.mrb[0].mxu0
        %v1075 = vadd.f32 %v880, %v1074
        %1076 = vdwg.mxu0
        %v1077 = vmul.f32 %v966, 0.2
        %v1078 = vmul.f32 %v968, 0.2
        %v1079 = vmul.f32 %v1055, 0.2
        %v1080 = vmul.f32 %v1057, 0.2
        %v1081 = vmul.f32 %v972, 0.2
        %v1082 = vmul.f32 %v974, 0.2
        %v1083 = vmul.f32 %v1061, 0.2
        %v1084 = vmul.f32 %v1063, 0.2
        %v1085 = vmul.f32 %v978, 0.2
        %v1086 = vmul.f32 %v980, 0.2
        %v1087 = vmul.f32 %v1067, 0.2
        %v1088 = vmul.f32 %v1069, 0.2
        %v1089 = vmul.f32 %v984, 0.2
        %v1090 = vmul.f32 %v986, 0.2
        %v1091 = vmul.f32 %v1073, 0.2
        %v1092 = vmul.f32 %v1075, 0.2
        %v1093 = vmax.f32 %v966, %v1077
        %v1094 = vmax.f32 %v968, %v1078
        %v1095 = vmax.f32 %v1055, %v1079
        %v1096 = vmax.f32 %v1057, %v1080
        %v1097 = vmax.f32 %v972, %v1081
        %v1098 = vmax.f32 %v974, %v1082
        %v1099 = vmax.f32 %v1061, %v1083
        %v1100 = vmax.f32 %v1063, %v1084
        %v1101 = vmax.f32 %v978, %v1085
        %v1102 = vmax.f32 %v980, %v1086
        %v1103 = vmax.f32 %v1067, %v1087
        %v1104 = vmax.f32 %v1069, %v1088
        %v1105 = vmax.f32 %v984, %v1089
        %v1106 = vmax.f32 %v986, %v1090
        %v1107 = vmax.f32 %v1073, %v1091
        %v1108 = vmax.f32 %v1075, %v1092
        %v1109 = vld [vmem:[#allocation7] sm:$0xff]
        %v1110 = vld [vmem:[#allocation7 + $0x8] sm:$0xff]
        %v1111 = vld [vmem:[#allocation7 + $0x10] sm:$0xff]
        %v1112 = vld [vmem:[#allocation7 + $0x18] sm:$0xff]
        %1114 = vset.pattern.permute.xlu0 32
        %1115 = vperm.xlu0 %1114, %v1109
        %v1116 = vpop.permute.xlu0 %1115
        %1119 = vset.pattern.permute.xlu0 32
        %1120 = vperm.xlu0 %1119, %v1110
        %v1121 = vpop.permute.xlu0 %1120
        %1124 = vset.pattern.permute.xlu0 32
        %1125 = vperm.xlu0 %1124, %v1111
        %v1126 = vpop.permute.xlu0 %1125
        %1129 = vset.pattern.permute.xlu0 32
        %1130 = vperm.xlu0 %1129, %v1112
        %v1131 = vpop.permute.xlu0 %1130
        %vm1133 = vcmask 261120
        %v1134 = vsel %vm1133, %v1109, 0
        %v1136 = vsel %vm1133, %v1110, 0
        %v1138 = vsel %vm1133, %v1111, 0
        %v1140 = vsel %vm1133, %v1112, 0
        %1142 = vmatprep.subr.mxu0 %v1094
        %1143 = vmatpush1.msra.mxu0 %v1093
        %1144 = vmatprep.subr.mxu0 %v1098
        %1145 = vmatpush1.msra.mxu0 %v1097
        %1146 = vmatprep.subr.mxu0 %v1102
        %1147 = vmatpush1.msra.mxu0 %v1101
        %1148 = vmatprep.subr.mxu0 %v1106
        %1149 = vmatpush1.msra.mxu0 %v1105
        %1150 = vmatprep.subr.mxu0 0.0
        %1151 = vmatpush1.msra.mxu0 0.0
        %1152 = vmatprep.subr.mxu0 0.0
        %1153 = vmatpush1.msra.mxu0 0.0
        %1154 = vmatprep.subr.mxu0 0.0
        %1155 = vmatpush1.msra.mxu0 0.0
        %1156 = vmatprep.subr.mxu0 0.0
        %1157 = vmatpush1.msra.mxu0 0.0
        %1158 = vmatprep.subr.mxu0 0.0
        %1159 = vmatpush1.msra.mxu0 0.0
        %1160 = vmatprep.subr.mxu0 0.0
        %1161 = vmatpush1.msra.mxu0 0.0
        %1162 = vmatprep.subr.mxu0 0.0
        %1163 = vmatpush1.msra.mxu0 0.0
        %1164 = vmatprep.subr.mxu0 0.0
        %1165 = vmatpush1.msra.mxu0 0.0
        %1166 = vmatprep.subr.mxu0 0.0
        %1167 = vmatpush1.msra.mxu0 0.0
        %1168 = vmatprep.subr.mxu0 0.0
        %1169 = vmatpush1.msra.mxu0 0.0
        %1170 = vmatprep.subr.mxu0 0.0
        %1171 = vmatpush1.msra.mxu0 0.0
        %1172 = vmatprep.subr.mxu0 0.0
        %1173 = vmatpush1.msra.mxu0 0.0
        %1174 = vmatprep.subr.mxu0 0.0
        %1175 = vmatpush1.msra.mxu0 0.0
        %1176 = vmatprep.subr.mxu0 0.0
        %1177 = vmatpush1.msra.mxu0 0.0
        %1178 = vmatprep.subr.mxu0 0.0
        %1179 = vmatpush1.msra.mxu0 0.0
        %1180 = vmatprep.subr.mxu0 0.0
        %1181 = vmatpush1.msra.mxu0 0.0
        %1182 = vmatprep.subr.mxu0 0.0
        %1183 = vmatpush1.msra.mxu0 0.0
        %1184 = vmatprep.subr.mxu0 0.0
        %1185 = vmatpush1.msra.mxu0 0.0
        %1186 = vmatprep.subr.mxu0 0.0
        %1187 = vmatpush1.msra.mxu0 0.0
        %1188 = vmatprep.subr.mxu0 0.0
        %1189 = vmatpush1.msra.mxu0 0.0
        %1190 = vmatprep.subr.mxu0 0.0
        %1191 = vmatpush1.msra.mxu0 0.0
        %1192 = vmatprep.subr.mxu0 0.0
        %1193 = vmatpush1.msra.mxu0 0.0
        %1194 = vmatprep.subr.mxu0 0.0
        %1195 = vmatpush1.msra.mxu0 0.0
        %1196 = vmatprep.subr.mxu0 0.0
        %1197 = vmatpush1.msra.mxu0 0.0
        %1198 = vmatprep.subr.mxu0 0.0
        %1199 = vmatpush1.msra.mxu0 0.0
        %1200 = vmatprep.subr.mxu0 0.0
        %1201 = vmatpush1.msra.mxu0 0.0
        %1202 = vmatprep.subr.mxu0 0.0
        %1203 = vmatpush1.msra.mxu0 0.0
        %1204 = vmatprep.subr.mxu0 0.0
        %1205 = vmatpush1.msra.mxu0 0.0
        %1206 = vmatprep.mubr.f32.mxu0 0.0
        %1207 = vmatmul.mubr.f32.gmra.mrb[0].mxu0 %v1134
        %v1208 = vpop.f32.mrb[0].mxu0
        %v1209 = vadd.f32 %v1116, %v1208
        %v1210 = vpop.f32.mrb[0].mxu0
        %v1211 = vadd.f32 %v1116, %v1210
        %1212 = vmatprep.mubr.f32.mxu0 0.0
        %1213 = vmatmul.mubr.f32.gmra.mrb[0].mxu0 %v1136
        %v1214 = vpop.f32.mrb[0].mxu0
        %v1215 = vadd.f32 %v1121, %v1214
        %v1216 = vpop.f32.mrb[0].mxu0
        %v1217 = vadd.f32 %v1121, %v1216
        %1218 = vmatprep.mubr.f32.mxu0 0.0
        %1219 = vmatmul.mubr.f32.gmra.mrb[0].mxu0 %v1138
        %v1220 = vpop.f32.mrb[0].mxu0
        %v1221 = vadd.f32 %v1126, %v1220
        %v1222 = vpop.f32.mrb[0].mxu0
        %v1223 = vadd.f32 %v1126, %v1222
        %1224 = vmatprep.mubr.f32.mxu0 0.0
        %1225 = vmatmul.mubr.f32.gmra.mrb[0].mxu0 %v1140
        %v1226 = vpop.f32.mrb[0].mxu0
        %v1227 = vadd.f32 %v1131, %v1226
        %v1228 = vpop.f32.mrb[0].mxu0
        %v1229 = vadd.f32 %v1131, %v1228
        %1230 = vdwg.mxu0
        %1231 = vmatprep.subr.mxu0 %v1096
        %1232 = vmatpush1.msra.mxu0 %v1095
        %1233 = vmatprep.subr.mxu0 %v1100
        %1234 = vmatpush1.msra.mxu0 %v1099
        %1235 = vmatprep.subr.mxu0 %v1104
        %1236 = vmatpush1.msra.mxu0 %v1103
        %1237 = vmatprep.subr.mxu0 %v1108
        %1238 = vmatpush1.msra.mxu0 %v1107
        %1239 = vmatprep.subr.mxu0 0.0
        %1240 = vmatpush1.msra.mxu0 0.0
        %1241 = vmatprep.subr.mxu0 0.0
        %1242 = vmatpush1.msra.mxu0 0.0
        %1243 = vmatprep.subr.mxu0 0.0
        %1244 = vmatpush1.msra.mxu0 0.0
        %1245 = vmatprep.subr.mxu0 0.0
        %1246 = vmatpush1.msra.mxu0 0.0
        %1247 = vmatprep.subr.mxu0 0.0
        %1248 = vmatpush1.msra.mxu0 0.0
        %1249 = vmatprep.subr.mxu0 0.0
        %1250 = vmatpush1.msra.mxu0 0.0
        %1251 = vmatprep.subr.mxu0 0.0
        %1252 = vmatpush1.msra.mxu0 0.0
        %1253 = vmatprep.subr.mxu0 0.0
        %1254 = vmatpush1.msra.mxu0 0.0
        %1255 = vmatprep.subr.mxu0 0.0
        %1256 = vmatpush1.msra.mxu0 0.0
        %1257 = vmatprep.subr.mxu0 0.0
        %1258 = vmatpush1.msra.mxu0 0.0
        %1259 = vmatprep.subr.mxu0 0.0
        %1260 = vmatpush1.msra.mxu0 0.0
        %1261 = vmatprep.subr.mxu0 0.0
        %1262 = vmatpush1.msra.mxu0 0.0
        %1263 = vmatprep.subr.mxu0 0.0
        %1264 = vmatpush1.msra.mxu0 0.0
        %1265 = vmatprep.subr.mxu0 0.0
        %1266 = vmatpush1.msra.mxu0 0.0
        %1267 = vmatprep.subr.mxu0 0.0
        %1268 = vmatpush1.msra.mxu0 0.0
        %1269 = vmatprep.subr.mxu0 0.0
        %1270 = vmatpush1.msra.mxu0 0.0
        %1271 = vmatprep.subr.mxu0 0.0
        %1272 = vmatpush1.msra.mxu0 0.0
        %1273 = vmatprep.subr.mxu0 0.0
        %1274 = vmatpush1.msra.mxu0 0.0
        %1275 = vmatprep.subr.mxu0 0.0
        %1276 = vmatpush1.msra.mxu0 0.0
        %1277 = vmatprep.subr.mxu0 0.0
        %1278 = vmatpush1.msra.mxu0 0.0
        %1279 = vmatprep.subr.mxu0 0.0
        %1280 = vmatpush1.msra.mxu0 0.0
        %1281 = vmatprep.subr.mxu0 0.0
        %1282 = vmatpush1.msra.mxu0 0.0
        %1283 = vmatprep.subr.mxu0 0.0
        %1284 = vmatpush1.msra.mxu0 0.0
        %1285 = vmatprep.subr.mxu0 0.0
        %1286 = vmatpush1.msra.mxu0 0.0
        %1287 = vmatprep.subr.mxu0 0.0
        %1288 = vmatpush1.msra.mxu0 0.0
        %1289 = vmatprep.subr.mxu0 0.0
        %1290 = vmatpush1.msra.mxu0 0.0
        %1291 = vmatprep.subr.mxu0 0.0
        %1292 = vmatpush1.msra.mxu0 0.0
        %1293 = vmatprep.subr.mxu0 0.0
        %1294 = vmatpush1.msra.mxu0 0.0
        %1295 = vmatprep.mubr.f32.mxu0 0.0
        %1296 = vmatmul.mubr.f32.gmra.mrb[0].mxu0 %v1134
        %v1297 = vpop.f32.mrb[0].mxu0
        %v1298 = vadd.f32 %v1116, %v1297
        %v1299 = vpop.f32.mrb[0].mxu0
        %v1300 = vadd.f32 %v1116, %v1299
        %1301 = vmatprep.mubr.f32.mxu0 0.0
        %1302 = vmatmul.mubr.f32.gmra.mrb[0].mxu0 %v1136
        %v1303 = vpop.f32.mrb[0].mxu0
        %v1304 = vadd.f32 %v1121, %v1303
        %v1305 = vpop.f32.mrb[0].mxu0
        %v1306 = vadd.f32 %v1121, %v1305
        %1307 = vmatprep.mubr.f32.mxu0 0.0
        %1308 = vmatmul.mubr.f32.gmra.mrb[0].mxu0 %v1138
        %v1309 = vpop.f32.mrb[0].mxu0
        %v1310 = vadd.f32 %v1126, %v1309
        %v1311 = vpop.f32.mrb[0].mxu0
        %v1312 = vadd.f32 %v1126, %v1311
        %1313 = vmatprep.mubr.f32.mxu0 0.0
        %1314 = vmatmul.mubr.f32.gmra.mrb[0].mxu0 %v1140
        %v1315 = vpop.f32.mrb[0].mxu0
        %v1316 = vadd.f32 %v1131, %v1315
        %v1317 = vpop.f32.mrb[0].mxu0
        %v1318 = vadd.f32 %v1131, %v1317
        %1319 = vdwg.mxu0
        %v1320 = vmul.f32 %v1209, 0.2
        %v1321 = vmul.f32 %v1211, 0.2
        %v1322 = vmul.f32 %v1298, 0.2
        %v1323 = vmul.f32 %v1300, 0.2
        %v1324 = vmul.f32 %v1215, 0.2
        %v1325 = vmul.f32 %v1217, 0.2
        %v1326 = vmul.f32 %v1304, 0.2
        %v1327 = vmul.f32 %v1306, 0.2
        %v1328 = vmul.f32 %v1221, 0.2
        %v1329 = vmul.f32 %v1223, 0.2
        %v1330 = vmul.f32 %v1310, 0.2
        %v1331 = vmul.f32 %v1312, 0.2
        %v1332 = vmul.f32 %v1227, 0.2
        %v1333 = vmul.f32 %v1229, 0.2
        %v1334 = vmul.f32 %v1316, 0.2
        %v1335 = vmul.f32 %v1318, 0.2
        %v1336 = vmax.f32 %v1209, %v1320
        %v1337 = vmax.f32 %v1211, %v1321
        %v1338 = vmax.f32 %v1298, %v1322
        %v1339 = vmax.f32 %v1300, %v1323
        %v1340 = vmax.f32 %v1215, %v1324
        %v1341 = vmax.f32 %v1217, %v1325
        %v1342 = vmax.f32 %v1304, %v1326
        %v1343 = vmax.f32 %v1306, %v1327
        %v1344 = vmax.f32 %v1221, %v1328
        %v1345 = vmax.f32 %v1223, %v1329
        %v1346 = vmax.f32 %v1310, %v1330
        %v1347 = vmax.f32 %v1312, %v1331
        %v1348 = vmax.f32 %v1227, %v1332
        %v1349 = vmax.f32 %v1229, %v1333
        %v1350 = vmax.f32 %v1316, %v1334
        %v1351 = vmax.f32 %v1318, %v1335
        %v1352 = vld [vmem:[#allocation8] sm:$0xff]
        %v1353 = vld [vmem:[#allocation8 + $0x8] sm:$0xff]
        %v1354 = vld [vmem:[#allocation8 + $0x10] sm:$0xff]
        %v1355 = vld [vmem:[#allocation8 + $0x18] sm:$0xff]
        %1357 = vset.pattern.permute.xlu0 32
        %1358 = vperm.xlu0 %1357, %v1352
        %v1359 = vpop.permute.xlu0 %1358
        %1362 = vset.pattern.permute.xlu0 32
        %1363 = vperm.xlu0 %1362, %v1353
        %v1364 = vpop.permute.xlu0 %1363
        %1367 = vset.pattern.permute.xlu0 32
        %1368 = vperm.xlu0 %1367, %v1354
        %v1369 = vpop.permute.xlu0 %1368
        %1372 = vset.pattern.permute.xlu0 32
        %1373 = vperm.xlu0 %1372, %v1355
        %v1374 = vpop.permute.xlu0 %1373
        %v1376 = vsel %vm1133, %v1352, 0
        %v1378 = vsel %vm1133, %v1353, 0
        %v1380 = vsel %vm1133, %v1354, 0
        %v1382 = vsel %vm1133, %v1355, 0
        %1384 = vmatprep.subr.mxu0 %v1337
        %1385 = vmatpush1.msra.mxu0 %v1336
        %1386 = vmatprep.subr.mxu0 %v1341
        %1387 = vmatpush1.msra.mxu0 %v1340
        %1388 = vmatprep.subr.mxu0 %v1345
        %1389 = vmatpush1.msra.mxu0 %v1344
        %1390 = vmatprep.subr.mxu0 %v1349
        %1391 = vmatpush1.msra.mxu0 %v1348
        %1392 = vmatprep.subr.mxu0 0.0
        %1393 = vmatpush1.msra.mxu0 0.0
        %1394 = vmatprep.subr.mxu0 0.0
        %1395 = vmatpush1.msra.mxu0 0.0
        %1396 = vmatprep.subr.mxu0 0.0
        %1397 = vmatpush1.msra.mxu0 0.0
        %1398 = vmatprep.subr.mxu0 0.0
        %1399 = vmatpush1.msra.mxu0 0.0
        %1400 = vmatprep.subr.mxu0 0.0
        %1401 = vmatpush1.msra.mxu0 0.0
        %1402 = vmatprep.subr.mxu0 0.0
        %1403 = vmatpush1.msra.mxu0 0.0
        %1404 = vmatprep.subr.mxu0 0.0
        %1405 = vmatpush1.msra.mxu0 0.0
        %1406 = vmatprep.subr.mxu0 0.0
        %1407 = vmatpush1.msra.mxu0 0.0
        %1408 = vmatprep.subr.mxu0 0.0
        %1409 = vmatpush1.msra.mxu0 0.0
        %1410 = vmatprep.subr.mxu0 0.0
        %1411 = vmatpush1.msra.mxu0 0.0
        %1412 = vmatprep.subr.mxu0 0.0
        %1413 = vmatpush1.msra.mxu0 0.0
        %1414 = vmatprep.subr.mxu0 0.0
        %1415 = vmatpush1.msra.mxu0 0.0
        %1416 = vmatprep.subr.mxu0 0.0
        %1417 = vmatpush1.msra.mxu0 0.0
        %1418 = vmatprep.subr.mxu0 0.0
        %1419 = vmatpush1.msra.mxu0 0.0
        %1420 = vmatprep.subr.mxu0 0.0
        %1421 = vmatpush1.msra.mxu0 0.0
        %1422 = vmatprep.subr.mxu0 0.0
        %1423 = vmatpush1.msra.mxu0 0.0
        %1424 = vmatprep.subr.mxu0 0.0
        %1425 = vmatpush1.msra.mxu0 0.0
        %1426 = vmatprep.subr.mxu0 0.0
        %1427 = vmatpush1.msra.mxu0 0.0
        %1428 = vmatprep.subr.mxu0 0.0
        %1429 = vmatpush1.msra.mxu0 0.0
        %1430 = vmatprep.subr.mxu0 0.0
        %1431 = vmatpush1.msra.mxu0 0.0
        %1432 = vmatprep.subr.mxu0 0.0
        %1433 = vmatpush1.msra.mxu0 0.0
        %1434 = vmatprep.subr.mxu0 0.0
        %1435 = vmatpush1.msra.mxu0 0.0
        %1436 = vmatprep.subr.mxu0 0.0
        %1437 = vmatpush1.msra.mxu0 0.0
        %1438 = vmatprep.subr.mxu0 0.0
        %1439 = vmatpush1.msra.mxu0 0.0
        %1440 = vmatprep.subr.mxu0 0.0
        %1441 = vmatpush1.msra.mxu0 0.0
        %1442 = vmatprep.subr.mxu0 0.0
        %1443 = vmatpush1.msra.mxu0 0.0
        %1444 = vmatprep.subr.mxu0 0.0
        %1445 = vmatpush1.msra.mxu0 0.0
        %1446 = vmatprep.subr.mxu0 0.0
        %1447 = vmatpush1.msra.mxu0 0.0
        %1448 = vmatprep.mubr.f32.mxu0 0.0
        %1449 = vmatmul.mubr.f32.gmra.mrb[0].mxu0 %v1376
        %v1450 = vpop.f32.mrb[0].mxu0
        %v1451 = vadd.f32 %v1359, %v1450
        %v1452 = vpop.f32.mrb[0].mxu0
        %v1453 = vadd.f32 %v1359, %v1452
        %1454 = vmatprep.mubr.f32.mxu0 0.0
        %1455 = vmatmul.mubr.f32.gmra.mrb[0].mxu0 %v1378
        %v1456 = vpop.f32.mrb[0].mxu0
        %v1457 = vadd.f32 %v1364, %v1456
        %v1458 = vpop.f32.mrb[0].mxu0
        %v1459 = vadd.f32 %v1364, %v1458
        %1460 = vmatprep.mubr.f32.mxu0 0.0
        %1461 = vmatmul.mubr.f32.gmra.mrb[0].mxu0 %v1380
        %v1462 = vpop.f32.mrb[0].mxu0
        %v1463 = vadd.f32 %v1369, %v1462
        %v1464 = vpop.f32.mrb[0].mxu0
        %v1465 = vadd.f32 %v1369, %v1464
        %1466 = vmatprep.mubr.f32.mxu0 0.0
        %1467 = vmatmul.mubr.f32.gmra.mrb[0].mxu0 %v1382
        %v1468 = vpop.f32.mrb[0].mxu0
        %v1469 = vadd.f32 %v1374, %v1468
        %v1470 = vpop.f32.mrb[0].mxu0
        %v1471 = vadd.f32 %v1374, %v1470
        %1472 = vdwg.mxu0
        %1473 = vmatprep.subr.mxu0 %v1339
        %1474 = vmatpush1.msra.mxu0 %v1338
        %1475 = vmatprep.subr.mxu0 %v1343
        %1476 = vmatpush1.msra.mxu0 %v1342
        %1477 = vmatprep.subr.mxu0 %v1347
        %1478 = vmatpush1.msra.mxu0 %v1346
        %1479 = vmatprep.subr.mxu0 %v1351
        %1480 = vmatpush1.msra.mxu0 %v1350
        %1481 = vmatprep.subr.mxu0 0.0
        %1482 = vmatpush1.msra.mxu0 0.0
        %1483 = vmatprep.subr.mxu0 0.0
        %1484 = vmatpush1.msra.mxu0 0.0
        %1485 = vmatprep.subr.mxu0 0.0
        %1486 = vmatpush1.msra.mxu0 0.0
        %1487 = vmatprep.subr.mxu0 0.0
        %1488 = vmatpush1.msra.mxu0 0.0
        %1489 = vmatprep.subr.mxu0 0.0
        %1490 = vmatpush1.msra.mxu0 0.0
        %1491 = vmatprep.subr.mxu0 0.0
        %1492 = vmatpush1.msra.mxu0 0.0
        %1493 = vmatprep.subr.mxu0 0.0
        %1494 = vmatpush1.msra.mxu0 0.0
        %1495 = vmatprep.subr.mxu0 0.0
        %1496 = vmatpush1.msra.mxu0 0.0
        %1497 = vmatprep.subr.mxu0 0.0
        %1498 = vmatpush1.msra.mxu0 0.0
        %1499 = vmatprep.subr.mxu0 0.0
        %1500 = vmatpush1.msra.mxu0 0.0
        %1501 = vmatprep.subr.mxu0 0.0
        %1502 = vmatpush1.msra.mxu0 0.0
        %1503 = vmatprep.subr.mxu0 0.0
        %1504 = vmatpush1.msra.mxu0 0.0
        %1505 = vmatprep.subr.mxu0 0.0
        %1506 = vmatpush1.msra.mxu0 0.0
        %1507 = vmatprep.subr.mxu0 0.0
        %1508 = vmatpush1.msra.mxu0 0.0
        %1509 = vmatprep.subr.mxu0 0.0
        %1510 = vmatpush1.msra.mxu0 0.0
        %1511 = vmatprep.subr.mxu0 0.0
        %1512 = vmatpush1.msra.mxu0 0.0
        %1513 = vmatprep.subr.mxu0 0.0
        %1514 = vmatpush1.msra.mxu0 0.0
        %1515 = vmatprep.subr.mxu0 0.0
        %1516 = vmatpush1.msra.mxu0 0.0
        %1517 = vmatprep.subr.mxu0 0.0
        %1518 = vmatpush1.msra.mxu0 0.0
        %1519 = vmatprep.subr.mxu0 0.0
        %1520 = vmatpush1.msra.mxu0 0.0
        %1521 = vmatprep.subr.mxu0 0.0
        %1522 = vmatpush1.msra.mxu0 0.0
        %1523 = vmatprep.subr.mxu0 0.0
        %1524 = vmatpush1.msra.mxu0 0.0
        %1525 = vmatprep.subr.mxu0 0.0
        %1526 = vmatpush1.msra.mxu0 0.0
        %1527 = vmatprep.subr.mxu0 0.0
        %1528 = vmatpush1.msra.mxu0 0.0
        %1529 = vmatprep.subr.mxu0 0.0
        %1530 = vmatpush1.msra.mxu0 0.0
        %1531 = vmatprep.subr.mxu0 0.0
        %1532 = vmatpush1.msra.mxu0 0.0
        %1533 = vmatprep.subr.mxu0 0.0
        %1534 = vmatpush1.msra.mxu0 0.0
        %1535 = vmatprep.subr.mxu0 0.0
        %1536 = vmatpush1.msra.mxu0 0.0
        %1537 = vmatprep.mubr.f32.mxu0 0.0
        %1538 = vmatmul.mubr.f32.gmra.mrb[0].mxu0 %v1376
        %v1539 = vpop.f32.mrb[0].mxu0
        %v1540 = vadd.f32 %v1359, %v1539
        %v1541 = vpop.f32.mrb[0].mxu0
        %v1542 = vadd.f32 %v1359, %v1541
        %1543 = vmatprep.mubr.f32.mxu0 0.0
        %1544 = vmatmul.mubr.f32.gmra.mrb[0].mxu0 %v1378
        %v1545 = vpop.f32.mrb[0].mxu0
        %v1546 = vadd.f32 %v1364, %v1545
        %v1547 = vpop.f32.mrb[0].mxu0
        %v1548 = vadd.f32 %v1364, %v1547
        %1549 = vmatprep.mubr.f32.mxu0 0.0
        %1550 = vmatmul.mubr.f32.gmra.mrb[0].mxu0 %v1380
        %v1551 = vpop.f32.mrb[0].mxu0
        %v1552 = vadd.f32 %v1369, %v1551
        %v1553 = vpop.f32.mrb[0].mxu0
        %v1554 = vadd.f32 %v1369, %v1553
        %1555 = vmatprep.mubr.f32.mxu0 0.0
        %1556 = vmatmul.mubr.f32.gmra.mrb[0].mxu0 %v1382
        %v1557 = vpop.f32.mrb[0].mxu0
        %v1558 = vadd.f32 %v1374, %v1557
        %v1559 = vpop.f32.mrb[0].mxu0
        %v1560 = vadd.f32 %v1374, %v1559
        %1561 = vdwg.mxu0
        %v1562 = vmul.f32 %v1451, 0.2
        %v1563 = vmul.f32 %v1453, 0.2
        %v1564 = vmul.f32 %v1540, 0.2
        %v1565 = vmul.f32 %v1542, 0.2
        %v1566 = vmul.f32 %v1457, 0.2
        %v1567 = vmul.f32 %v1459, 0.2
        %v1568 = vmul.f32 %v1546, 0.2
        %v1569 = vmul.f32 %v1548, 0.2
        %v1570 = vmul.f32 %v1463, 0.2
        %v1571 = vmul.f32 %v1465, 0.2
        %v1572 = vmul.f32 %v1552, 0.2
        %v1573 = vmul.f32 %v1554, 0.2
        %v1574 = vmul.f32 %v1469, 0.2
        %v1575 = vmul.f32 %v1471, 0.2
        %v1576 = vmul.f32 %v1558, 0.2
        %v1577 = vmul.f32 %v1560, 0.2
        %v1578 = vmax.f32 %v1451, %v1562
        %v1579 = vmax.f32 %v1453, %v1563
        %v1580 = vmax.f32 %v1540, %v1564
        %v1581 = vmax.f32 %v1542, %v1565
        %v1582 = vmax.f32 %v1457, %v1566
        %v1583 = vmax.f32 %v1459, %v1567
        %v1584 = vmax.f32 %v1546, %v1568
        %v1585 = vmax.f32 %v1548, %v1569
        %v1586 = vmax.f32 %v1463, %v1570
        %v1587 = vmax.f32 %v1465, %v1571
        %v1588 = vmax.f32 %v1552, %v1572
        %v1589 = vmax.f32 %v1554, %v1573
        %v1590 = vmax.f32 %v1469, %v1574
        %v1591 = vmax.f32 %v1471, %v1575
        %v1592 = vmax.f32 %v1558, %v1576
        %v1593 = vmax.f32 %v1560, %v1577
        %v1594 = vld [vmem:[%s4] sm:$0x7]
        %1596 = vset.pattern.permute.xlu0 32
        %1597 = vperm.xlu0 %1596, %v1594
        %v1598 = vpop.permute.xlu0 %1597
        %v1600 = vsel %vm1133, %v1594, 0
        %1602 = vmatprep.subr.mxu0 %v1579
        %1603 = vmatpush1.msra.mxu0 %v1578
        %1604 = vmatprep.subr.mxu0 %v1583
        %1605 = vmatpush1.msra.mxu0 %v1582
        %1606 = vmatprep.subr.mxu0 %v1587
        %1607 = vmatpush1.msra.mxu0 %v1586
        %1608 = vmatprep.subr.mxu0 %v1591
        %1609 = vmatpush1.msra.mxu0 %v1590
        %1610 = vmatprep.subr.mxu0 0.0
        %1611 = vmatpush1.msra.mxu0 0.0
        %1612 = vmatprep.subr.mxu0 0.0
        %1613 = vmatpush1.msra.mxu0 0.0
        %1614 = vmatprep.subr.mxu0 0.0
        %1615 = vmatpush1.msra.mxu0 0.0
        %1616 = vmatprep.subr.mxu0 0.0
        %1617 = vmatpush1.msra.mxu0 0.0
        %1618 = vmatprep.subr.mxu0 0.0
        %1619 = vmatpush1.msra.mxu0 0.0
        %1620 = vmatprep.subr.mxu0 0.0
        %1621 = vmatpush1.msra.mxu0 0.0
        %1622 = vmatprep.subr.mxu0 0.0
        %1623 = vmatpush1.msra.mxu0 0.0
        %1624 = vmatprep.subr.mxu0 0.0
        %1625 = vmatpush1.msra.mxu0 0.0
        %1626 = vmatprep.subr.mxu0 0.0
        %1627 = vmatpush1.msra.mxu0 0.0
        %1628 = vmatprep.subr.mxu0 0.0
        %1629 = vmatpush1.msra.mxu0 0.0
        %1630 = vmatprep.subr.mxu0 0.0
        %1631 = vmatpush1.msra.mxu0 0.0
        %1632 = vmatprep.subr.mxu0 0.0
        %1633 = vmatpush1.msra.mxu0 0.0
        %1634 = vmatprep.subr.mxu0 0.0
        %1635 = vmatpush1.msra.mxu0 0.0
        %1636 = vmatprep.subr.mxu0 0.0
        %1637 = vmatpush1.msra.mxu0 0.0
        %1638 = vmatprep.subr.mxu0 0.0
        %1639 = vmatpush1.msra.mxu0 0.0
        %1640 = vmatprep.subr.mxu0 0.0
        %1641 = vmatpush1.msra.mxu0 0.0
        %1642 = vmatprep.subr.mxu0 0.0
        %1643 = vmatpush1.msra.mxu0 0.0
        %1644 = vmatprep.subr.mxu0 0.0
        %1645 = vmatpush1.msra.mxu0 0.0
        %1646 = vmatprep.subr.mxu0 0.0
        %1647 = vmatpush1.msra.mxu0 0.0
        %1648 = vmatprep.subr.mxu0 0.0
        %1649 = vmatpush1.msra.mxu0 0.0
        %1650 = vmatprep.subr.mxu0 0.0
        %1651 = vmatpush1.msra.mxu0 0.0
        %1652 = vmatprep.subr.mxu0 0.0
        %1653 = vmatpush1.msra.mxu0 0.0
        %1654 = vmatprep.subr.mxu0 0.0
        %1655 = vmatpush1.msra.mxu0 0.0
        %1656 = vmatprep.subr.mxu0 0.0
        %1657 = vmatpush1.msra.mxu0 0.0
        %1658 = vmatprep.subr.mxu0 0.0
        %1659 = vmatpush1.msra.mxu0 0.0
        %1660 = vmatprep.subr.mxu0 0.0
        %1661 = vmatpush1.msra.mxu0 0.0
        %1662 = vmatprep.subr.mxu0 0.0
        %1663 = vmatpush1.msra.mxu0 0.0
        %1664 = vmatprep.subr.mxu0 0.0
        %1665 = vmatpush1.msra.mxu0 0.0
        %1666 = vmatprep.mubr.f32.mxu0 0.0
        %1667 = vmatmul.mubr.f32.gmra.mrb[0].mxu0 %v1600
        %v1668 = vpop.f32.mrb[0].mxu0
        %v1669 = vadd.f32 %v1598, %v1668
        %v1670 = vpop.f32.mrb[0].mxu0
        %v1671 = vadd.f32 %v1598, %v1670
        %1672 = vdwg.mxu0
        %1673 = vmatprep.subr.mxu0 %v1581
        %1674 = vmatpush1.msra.mxu0 %v1580
        %1675 = vmatprep.subr.mxu0 %v1585
        %1676 = vmatpush1.msra.mxu0 %v1584
        %1677 = vmatprep.subr.mxu0 %v1589
        %1678 = vmatpush1.msra.mxu0 %v1588
        %1679 = vmatprep.subr.mxu0 %v1593
        %1680 = vmatpush1.msra.mxu0 %v1592
        %1681 = vmatprep.subr.mxu0 0.0
        %1682 = vmatpush1.msra.mxu0 0.0
        %1683 = vmatprep.subr.mxu0 0.0
        %1684 = vmatpush1.msra.mxu0 0.0
        %1685 = vmatprep.subr.mxu0 0.0
        %1686 = vmatpush1.msra.mxu0 0.0
        %1687 = vmatprep.subr.mxu0 0.0
        %1688 = vmatpush1.msra.mxu0 0.0
        %1689 = vmatprep.subr.mxu0 0.0
        %1690 = vmatpush1.msra.mxu0 0.0
        %1691 = vmatprep.subr.mxu0 0.0
        %1692 = vmatpush1.msra.mxu0 0.0
        %1693 = vmatprep.subr.mxu0 0.0
        %1694 = vmatpush1.msra.mxu0 0.0
        %1695 = vmatprep.subr.mxu0 0.0
        %1696 = vmatpush1.msra.mxu0 0.0
        %1697 = vmatprep.subr.mxu0 0.0
        %1698 = vmatpush1.msra.mxu0 0.0
        %1699 = vmatprep.subr.mxu0 0.0
        %1700 = vmatpush1.msra.mxu0 0.0
        %1701 = vmatprep.subr.mxu0 0.0
        %1702 = vmatpush1.msra.mxu0 0.0
        %1703 = vmatprep.subr.mxu0 0.0
        %1704 = vmatpush1.msra.mxu0 0.0
        %1705 = vmatprep.subr.mxu0 0.0
        %1706 = vmatpush1.msra.mxu0 0.0
        %1707 = vmatprep.subr.mxu0 0.0
        %1708 = vmatpush1.msra.mxu0 0.0
        %1709 = vmatprep.subr.mxu0 0.0
        %1710 = vmatpush1.msra.mxu0 0.0
        %1711 = vmatprep.subr.mxu0 0.0
        %1712 = vmatpush1.msra.mxu0 0.0
        %1713 = vmatprep.subr.mxu0 0.0
        %1714 = vmatpush1.msra.mxu0 0.0
        %1715 = vmatprep.subr.mxu0 0.0
        %1716 = vmatpush1.msra.mxu0 0.0
        %1717 = vmatprep.subr.mxu0 0.0
        %1718 = vmatpush1.msra.mxu0 0.0
        %1719 = vmatprep.subr.mxu0 0.0
        %1720 = vmatpush1.msra.mxu0 0.0
        %1721 = vmatprep.subr.mxu0 0.0
        %1722 = vmatpush1.msra.mxu0 0.0
        %1723 = vmatprep.subr.mxu0 0.0
        %1724 = vmatpush1.msra.mxu0 0.0
        %1725 = vmatprep.subr.mxu0 0.0
        %1726 = vmatpush1.msra.mxu0 0.0
        %1727 = vmatprep.subr.mxu0 0.0
        %1728 = vmatpush1.msra.mxu0 0.0
        %1729 = vmatprep.subr.mxu0 0.0
        %1730 = vmatpush1.msra.mxu0 0.0
        %1731 = vmatprep.subr.mxu0 0.0
        %1732 = vmatpush1.msra.mxu0 0.0
        %1733 = vmatprep.subr.mxu0 0.0
        %1734 = vmatpush1.msra.mxu0 0.0
        %1735 = vmatprep.subr.mxu0 0.0
        %1736 = vmatpush1.msra.mxu0 0.0
        %1737 = vmatprep.mubr.f32.mxu0 0.0
        %1738 = vmatmul.mubr.f32.gmra.mrb[0].mxu0 %v1600
        %v1739 = vpop.f32.mrb[0].mxu0
        %v1740 = vadd.f32 %v1598, %v1739
        %v1741 = vpop.f32.mrb[0].mxu0
        %v1742 = vadd.f32 %v1598, %v1741
        %1743 = vdwg.mxu0
        %v1744 = vxor.u32 %v1669, 2147483648
        %v1745 = vxor.u32 %v1671, 2147483648
        %v1746 = vxor.u32 %v1740, 2147483648
        %v1747 = vxor.u32 %v1742, 2147483648
        %v1748 = vmul.f32 %v1744, 1.442695
        %v1749 = vpow.pop %v1748
        %v1750 = vmul.f32 %v1745, 1.442695
        %v1751 = vpow.pop %v1750
        %v1752 = vmul.f32 %v1746, 1.442695
        %v1753 = vpow.pop %v1752
        %v1754 = vmul.f32 %v1747, 1.442695
        %v1755 = vpow.pop %v1754
        %v1756 = vadd.f32 %v1749, 1.0
        %v1757 = vadd.f32 %v1751, 1.0
        %v1758 = vadd.f32 %v1753, 1.0
        %v1759 = vadd.f32 %v1755, 1.0
        %v1760 = vrcp.pop %v1756
        %v1761 = vmul.f32 1.0, %v1760
        %v1762 = vrcp.pop %v1757
        %v1763 = vmul.f32 1.0, %v1762
        %v1764 = vrcp.pop %v1758
        %v1765 = vmul.f32 1.0, %v1764
        %v1766 = vrcp.pop %v1759
        %v1767 = vmul.f32 1.0, %v1766
        %v1772 = vcombine.low %v1761, %v1763
        %v1773 = vcombine.low %v1765, %v1767
        %1776 = vst [vmem:[%s284] sm:$0x77] %v1772
        %1777 = vst [vmem:[%s284 + $0x8] sm:$0x77] %v1773
        %s1778 = sand.u32 %s142, 1
        %s1779 = scalar_lea.sflag [#allocation4], %s1778
        %s1780 = sand.u32 %s142, 1
        %s1781 = smul.addr %s1780, 16
        %s1782 = scalar_lea.vmem [#allocation10], %s1781
        // Predicated region
        $region57: #{tpu_custom_call.1} parent=39 // pred_check
          %p1783 = pneg %p152
        $region58: #{tpu_custom_call.1} parent=39 // pred_check_branch
          %1785 = sbr.rel (%p1783) target = $region60
        $region59: #{tpu_custom_call.1} parent=39 // pred_region
          %s1786 = smul.u32 4, %s24
          %s1788 = ssub.s32 256, 256
          %1789 = vsyncadd %s1779, %s1788
          %s1790 = smul.addr %s1786, 64
          %s1791 = scalar_lea.hbm %s5, %s1790
          %s1793 = sshll.u32 %s1782, 4
          %s1794 = int_to_ptr.vmem [resolvable:$true] %s1793
          %1796 = dma.vmem_to_hbm [thread:$0]  %s1794, 256, %s1791, %s1779
        $region60: #{tpu_custom_call.1} parent=39 // pred_fallthru
          _
      $region40: #{tpu_custom_call.1} parent=5 // pred_fallthru
        _
      %p1797 = scmp.le.s32.totalorder 2, %s19
      // Predicated region
      $region61: #{tpu_custom_call.1} parent=5 // pred_check
        %p1798 = pneg %p1797
      $region62: #{tpu_custom_call.1} parent=5 // pred_check_branch
        %1800 = sbr.rel (%p1798) target = $region64
      $region63: #{tpu_custom_call.1} parent=5 // pred_region
        %s1801 = ssub.s32 %s19, 2
        // Predicated region
        $region65: #{tpu_custom_call.1} parent=63 // pred_check
          %p1802 = pneg %p158
        $region66: #{tpu_custom_call.1} parent=63 // pred_check_branch
          %1804 = sbr.rel (%p1802) target = $region68
        $region67: #{tpu_custom_call.1} parent=63 // pred_region
          %s1805 = sand.u32 %s143, 1
          %s1806 = scalar_lea.sflag [#allocation4], %s1805
          %s1807 = sand.u32 %s143, 1
          %s1808 = smul.addr %s1807, 16
          %s1809 = scalar_lea.vmem [#allocation10], %s1808
          %1810 = dma.done %s1806, 256
        $region68: #{tpu_custom_call.1} parent=63 // pred_fallthru
          _
      $region64: #{tpu_custom_call.1} parent=5 // pred_fallthru
        _
    $region6: #{tpu_custom_call.1} parent=1 // loop_footer
      %s23 = sadd.s32 1, %s19
    $region7: #{tpu_custom_call.1} parent=1 // loop_footer_branch
      %18 = sbr.rel target = $region3
    $region8: #{tpu_custom_call.1} parent=1 // loop_exit
      _
    %1811 = vsyncpa [#allocation3], 1
    %s1812 = scalar_lea.sflag [#allocation3], 1
    %1813 = vsyncpa %s1812, 1
    %1814 = vsyncpa [#allocation6], 1
    %1815 = vsyncpa [#allocation9], 1
    %1816 = vsyncpa [#allocation4], 1
    %s1817 = scalar_lea.sflag [#allocation4], 1
    %1818 = vsyncpa %s1817, 1

</llo_original>
